<compile_context>
chip_gen: v7x
topology: tpu7x:2x2x1
jax: 0.10.0
libtpu: 0.0.40
codegen_flags: <defaults>
</compile_context>

<pallas_src>
import functools

import jax
import jax.numpy as jnp
from jax.experimental import pallas as pl
from jax.experimental.pallas import tpu as pltpu


def lstm_kernel(x_ref, wih0_ref, whh0_ref, b0_ref,
                wih1_ref, whh1_ref, b1_ref,
                wfc_ref, bfc_ref, out_ref,
                h0_all_s,
                *, hidden_size, seq_len, batch):
    H, T, B = hidden_size, seq_len, batch

    def gates(g, c_prev):
        # PyTorch gate order: i, f, g, o
        i = jax.nn.sigmoid(g[:, 0 * H:1 * H])
        f = jax.nn.sigmoid(g[:, 1 * H:2 * H])
        gg = jnp.tanh(g[:, 2 * H:3 * H])
        o = jax.nn.sigmoid(g[:, 3 * H:4 * H])
        c_new = f * c_prev + i * gg
        h_new = o * jnp.tanh(c_new)
        return h_new, c_new

    # ---- Phase 1: layer-0 input projection for ALL timesteps (one matmul) ----
    # x_ref is time-major flattened: [T*B, I]
    gx0 = (jnp.dot(x_ref[...], wih0_ref[...], preferred_element_type=jnp.float32)
           + b0_ref[...])                                        # [T*B, 4H]

    # ---- Phase 2: layer-0 recurrence (h/c in registers, weights hoisted) ----
    whh0 = whh0_ref[...]
    h = jnp.zeros((B, H), jnp.float32)   # zero init == _reset_hidden_state
    c = jnp.zeros((B, H), jnp.float32)
    for t in range(T):                   # static full unroll (T is small)
        g = gx0[t * B:(t + 1) * B, :] + jnp.dot(
            h, whh0, preferred_element_type=jnp.float32)
        h, c = gates(g, c)
        h0_all_s[t * B:(t + 1) * B, :] = h   # layer-0 hidden history [T*B, H]

    # ---- Phase 3: layer-1 input projection for ALL timesteps (one matmul) ----
    gx1 = (jnp.dot(h0_all_s[...], wih1_ref[...],
                   preferred_element_type=jnp.float32)
           + b1_ref[...])                                        # [T*B, 4H]

    # ---- Phase 4: layer-1 recurrence ----
    whh1 = whh1_ref[...]
    h = jnp.zeros((B, H), jnp.float32)
    c = jnp.zeros((B, H), jnp.float32)
    for t in range(T):
        g = gx1[t * B:(t + 1) * B, :] + jnp.dot(
            h, whh1, preferred_element_type=jnp.float32)
        h, c = gates(g, c)

    # ---- Phase 5: out[:, -1, :] == last-step h1; eval-mode dropout = identity ----
    out_ref[...] = (jnp.dot(h, wfc_ref[...], preferred_element_type=jnp.float32)
                    + bfc_ref[...])


def lstm_forward(x, params, hidden_size):
    """x: [B, T, input_size] float32 (batch_first, as in the PyTorch module)."""
    B, T, I = x.shape
    (wih0, whh0, b0, wih1, whh1, b1, wfc, bfc) = params
    out_dim = wfc.shape[1]

    # time-major then flatten so all per-step input projections become one matmul
    x_flat = jnp.transpose(x, (1, 0, 2)).reshape(T * B, I)

    kernel = functools.partial(lstm_kernel,
                               hidden_size=hidden_size, seq_len=T, batch=B)

    return pl.pallas_call(
        kernel,
        out_shape=jax.ShapeDtypeStruct((B, out_dim), jnp.float32),
        in_specs=[pl.BlockSpec(memory_space=pltpu.MemorySpace.VMEM)] * 9,
        out_specs=pl.BlockSpec(memory_space=pltpu.MemorySpace.VMEM),
        scratch_shapes=[pltpu.VMEM((T * B, hidden_size), jnp.float32)],
    )(x_flat, wih0, whh0, b0, wih1, whh1, b1, wfc, bfc)


def lstm_reference(x, params, hidden_size):
    """Pure-JAX reference implementing the same eval-mode forward."""
    (wih0, whh0, b0, wih1, whh1, b1, wfc, bfc) = params
    B, T, _ = x.shape
    H = hidden_size

    def cell(x_t, h_prev, c_prev, wih, whh, b):
        g = x_t @ wih + h_prev @ whh + b
        i = jax.nn.sigmoid(g[:, 0 * H:1 * H])
        f = jax.nn.sigmoid(g[:, 1 * H:2 * H])
        gg = jnp.tanh(g[:, 2 * H:3 * H])
        o = jax.nn.sigmoid(g[:, 3 * H:4 * H])
        c = f * c_prev + i * gg
        h = o * jnp.tanh(c)
        return h, c

    h0 = jnp.zeros((B, H), jnp.float32)
    c0 = jnp.zeros((B, H), jnp.float32)
    h1 = jnp.zeros((B, H), jnp.float32)
    c1 = jnp.zeros((B, H), jnp.float32)
    for t in range(T):
        h0, c0 = cell(x[:, t, :], h0, c0, wih0, whh0, b0)
        h1, c1 = cell(h0, h1, c1, wih1, whh1, b1)
    return h1 @ wfc + bfc


def make_params(key, input_size, hidden_size, output_size):
    """Deterministic synthetic parameters (PyTorch-shaped, then transposed)."""
    H = hidden_size
    ks = jax.random.split(key, 10)
    scale = 1.0 / jnp.sqrt(H)

    def u(k, shape):
        return jax.random.uniform(k, shape, jnp.float32, -scale, scale)

    # layer 0: W_ih [4H, I], W_hh [4H, H], b_ih [4H], b_hh [4H]
    w_ih0 = u(ks[0], (4 * H, input_size))
    w_hh0 = u(ks[1], (4 * H, H))
    b0 = u(ks[2], (4 * H,)) + u(ks[3], (4 * H,))        # b_ih + b_hh folded together
    # layer 1: input is layer-0 hidden
    w_ih1 = u(ks[4], (4 * H, H))
    w_hh1 = u(ks[5], (4 * H, H))
    b1 = u(ks[6], (4 * H,)) + u(ks[7], (4 * H,))
    # fc: [out, H], bias [out]
    w_fc = u(ks[8], (output_size, H))
    b_fc = u(ks[9], (output_size,))

    # pre-transpose for the kernel (x @ W layout) and make biases 2-D
    return (w_ih0.T, w_hh0.T, b0[None, :],
            w_ih1.T, w_hh1.T, b1[None, :],
            w_fc.T, b_fc[None, :])


if __name__ == "__main__":
    # small shapes consistent with the module's forward
    B, T, INPUT_SIZE = 2, 8, 16
    HIDDEN = 32
    LSTM_OUTPUT_SIZE = 4

    key = jax.random.PRNGKey(0)
    k_x, k_p = jax.random.split(key)
    x = jax.random.normal(k_x, (B, T, INPUT_SIZE), jnp.float32)
    params = make_params(k_p, INPUT_SIZE, HIDDEN, LSTM_OUTPUT_SIZE)

    # TODO(synk): dropout layers (p=0.5 on the head, 0.3 inter-layer) are train-time
    # only; this kernel implements eval-mode forward (dropout == identity).

    out = lstm_forward(x, params, HIDDEN)
    out = jax.block_until_ready(out)

    ref = lstm_reference(x, params, HIDDEN)
    assert out.shape == (B, LSTM_OUTPUT_SIZE)
    assert jnp.allclose(out, ref, atol=1e-5, rtol=1e-5), (out, ref)

    print("KERNEL_OK")
</pallas_src>

<mosaic_0001>
module attributes {stable_mosaic.version = 11 : i64} {
  func.func @lstm_kernel(%arg0: memref<16x16xf32, #tpu.memory_space<vmem>>, %arg1: memref<16x128xf32, #tpu.memory_space<vmem>>, %arg2: memref<32x128xf32, #tpu.memory_space<vmem>>, %arg3: memref<1x128xf32, #tpu.memory_space<vmem>>, %arg4: memref<32x128xf32, #tpu.memory_space<vmem>>, %arg5: memref<32x128xf32, #tpu.memory_space<vmem>>, %arg6: memref<1x128xf32, #tpu.memory_space<vmem>>, %arg7: memref<32x4xf32, #tpu.memory_space<vmem>>, %arg8: memref<1x4xf32, #tpu.memory_space<vmem>>, %arg9: memref<2x4xf32, #tpu.memory_space<vmem>>, %arg10: memref<16x32xf32, #tpu.memory_space<vmem>>) attributes {dimension_semantics = [], scalar_prefetch = 0 : i64, scratch_operands = 1 : i64, tpu.core_type = #tpu.core_type<tc>} {
    %c0 = arith.constant 0 : index
    %c0_0 = arith.constant 0 : index
    %0 = vector.load %arg0[%c0, %c0_0] : memref<16x16xf32, #tpu.memory_space<vmem>>, vector<16x16xf32>
    %c0_1 = arith.constant 0 : index
    %c0_2 = arith.constant 0 : index
    %1 = vector.load %arg1[%c0_1, %c0_2] : memref<16x128xf32, #tpu.memory_space<vmem>>, vector<16x128xf32>
    %cst = arith.constant dense<0.000000e+00> : vector<16x128xf32>
    %2 = tpu.matmul %0, %1, %cst {dimension_numbers = #tpu.dot_dimension_numbers<[1], [0], [0], [1], [0, 0, 1, 1], [], []>} : vector<16x16xf32>, vector<16x128xf32>, vector<16x128xf32> -> vector<16x128xf32>
    %c0_3 = arith.constant 0 : index
    %c0_4 = arith.constant 0 : index
    %3 = vector.load %arg3[%c0_3, %c0_4] : memref<1x128xf32, #tpu.memory_space<vmem>>, vector<1x128xf32>
    %4 = vector.broadcast %3 : vector<1x128xf32> to vector<16x128xf32>
    %5 = arith.addf %2, %4 : vector<16x128xf32>
    %c0_5 = arith.constant 0 : index
    %c0_6 = arith.constant 0 : index
    %6 = vector.load %arg2[%c0_5, %c0_6] : memref<32x128xf32, #tpu.memory_space<vmem>>, vector<32x128xf32>
    %cst_7 = arith.constant 0.000000e+00 : f32
    %7 = vector.broadcast %cst_7 : f32 to vector<2x32xf32>
    %cst_8 = arith.constant 0.000000e+00 : f32
    %8 = vector.broadcast %cst_8 : f32 to vector<2x32xf32>
    %9 = vector.extract_strided_slice %5 {offsets = [0, 0], sizes = [2, 128], strides = [1, 1]} : vector<16x128xf32> to vector<2x128xf32>
    %cst_9 = arith.constant dense<0.000000e+00> : vector<2x128xf32>
    %10 = tpu.matmul %7, %6, %cst_9 {dimension_numbers = #tpu.dot_dimension_numbers<[1], [0], [0], [1], [0, 0, 1, 1], [], []>} : vector<2x32xf32>, vector<32x128xf32>, vector<2x128xf32> -> vector<2x128xf32>
    %11 = arith.addf %9, %10 : vector<2x128xf32>
    %12 = vector.extract_strided_slice %11 {offsets = [0, 0], sizes = [2, 32], strides = [1, 1]} : vector<2x128xf32> to vector<2x32xf32>
    %13 = arith.negf %12 : vector<2x32xf32>
    %14 = math.exp %13 : vector<2x32xf32>
    %cst_10 = arith.constant 1.000000e+00 : f32
    %15 = vector.broadcast %cst_10 : f32 to vector<2x32xf32>
    %16 = arith.addf %15, %14 : vector<2x32xf32>
    %17 = arith.divf %15, %16 : vector<2x32xf32>
    %18 = vector.extract_strided_slice %11 {offsets = [0, 32], sizes = [2, 32], strides = [1, 1]} : vector<2x128xf32> to vector<2x32xf32>
    %19 = arith.negf %18 : vector<2x32xf32>
    %20 = math.exp %19 : vector<2x32xf32>
    %cst_11 = arith.constant 1.000000e+00 : f32
    %21 = vector.broadcast %cst_11 : f32 to vector<2x32xf32>
    %22 = arith.addf %21, %20 : vector<2x32xf32>
    %23 = arith.divf %21, %22 : vector<2x32xf32>
    %24 = vector.extract_strided_slice %11 {offsets = [0, 64], sizes = [2, 32], strides = [1, 1]} : vector<2x128xf32> to vector<2x32xf32>
    %25 = math.tanh %24 : vector<2x32xf32>
    %26 = vector.extract_strided_slice %11 {offsets = [0, 96], sizes = [2, 32], strides = [1, 1]} : vector<2x128xf32> to vector<2x32xf32>
    %27 = arith.negf %26 : vector<2x32xf32>
    %28 = math.exp %27 : vector<2x32xf32>
    %cst_12 = arith.constant 1.000000e+00 : f32
    %29 = vector.broadcast %cst_12 : f32 to vector<2x32xf32>
    %30 = arith.addf %29, %28 : vector<2x32xf32>
    %31 = arith.divf %29, %30 : vector<2x32xf32>
    %32 = arith.mulf %23, %8 : vector<2x32xf32>
    %33 = arith.mulf %17, %25 : vector<2x32xf32>
    %34 = arith.addf %32, %33 : vector<2x32xf32>
    %35 = math.tanh %34 : vector<2x32xf32>
    %36 = arith.mulf %31, %35 : vector<2x32xf32>
    %c0_13 = arith.constant 0 : index
    %c0_14 = arith.constant 0 : index
    %37 = vector.load %arg10[%c0_13, %c0_14] : memref<16x32xf32, #tpu.memory_space<vmem>>, vector<2x32xf32>
    tpu.vector_store %arg10[%c0_13, %c0_14], %36 {strides = array<i32>} : memref<16x32xf32, #tpu.memory_space<vmem>>, vector<2x32xf32>,
    %38 = vector.extract_strided_slice %5 {offsets = [2, 0], sizes = [2, 128], strides = [1, 1]} : vector<16x128xf32> to vector<2x128xf32>
    %cst_15 = arith.constant dense<0.000000e+00> : vector<2x128xf32>
    %39 = tpu.matmul %36, %6, %cst_15 {dimension_numbers = #tpu.dot_dimension_numbers<[1], [0], [0], [1], [0, 0, 1, 1], [], []>} : vector<2x32xf32>, vector<32x128xf32>, vector<2x128xf32> -> vector<2x128xf32>
    %40 = arith.addf %38, %39 : vector<2x128xf32>
    %41 = vector.extract_strided_slice %40 {offsets = [0, 0], sizes = [2, 32], strides = [1, 1]} : vector<2x128xf32> to vector<2x32xf32>
    %42 = arith.negf %41 : vector<2x32xf32>
    %43 = math.exp %42 : vector<2x32xf32>
    %cst_16 = arith.constant 1.000000e+00 : f32
    %44 = vector.broadcast %cst_16 : f32 to vector<2x32xf32>
    %45 = arith.addf %44, %43 : vector<2x32xf32>
    %46 = arith.divf %44, %45 : vector<2x32xf32>
    %47 = vector.extract_strided_slice %40 {offsets = [0, 32], sizes = [2, 32], strides = [1, 1]} : vector<2x128xf32> to vector<2x32xf32>
    %48 = arith.negf %47 : vector<2x32xf32>
    %49 = math.exp %48 : vector<2x32xf32>
    %cst_17 = arith.constant 1.000000e+00 : f32
    %50 = vector.broadcast %cst_17 : f32 to vector<2x32xf32>
    %51 = arith.addf %50, %49 : vector<2x32xf32>
    %52 = arith.divf %50, %51 : vector<2x32xf32>
    %53 = vector.extract_strided_slice %40 {offsets = [0, 64], sizes = [2, 32], strides = [1, 1]} : vector<2x128xf32> to vector<2x32xf32>
    %54 = math.tanh %53 : vector<2x32xf32>
    %55 = vector.extract_strided_slice %40 {offsets = [0, 96], sizes = [2, 32], strides = [1, 1]} : vector<2x128xf32> to vector<2x32xf32>
    %56 = arith.negf %55 : vector<2x32xf32>
    %57 = math.exp %56 : vector<2x32xf32>
    %cst_18 = arith.constant 1.000000e+00 : f32
    %58 = vector.broadcast %cst_18 : f32 to vector<2x32xf32>
    %59 = arith.addf %58, %57 : vector<2x32xf32>
    %60 = arith.divf %58, %59 : vector<2x32xf32>
    %61 = arith.mulf %52, %34 : vector<2x32xf32>
    %62 = arith.mulf %46, %54 : vector<2x32xf32>
    %63 = arith.addf %61, %62 : vector<2x32xf32>
    %64 = math.tanh %63 : vector<2x32xf32>
    %65 = arith.mulf %60, %64 : vector<2x32xf32>
    %c2 = arith.constant 2 : index
    %c0_19 = arith.constant 0 : index
    %66 = vector.load %arg10[%c2, %c0_19] : memref<16x32xf32, #tpu.memory_space<vmem>>, vector<2x32xf32>
    tpu.vector_store %arg10[%c2, %c0_19], %65 {strides = array<i32>} : memref<16x32xf32, #tpu.memory_space<vmem>>, vector<2x32xf32>,
    %67 = vector.extract_strided_slice %5 {offsets = [4, 0], sizes = [2, 128], strides = [1, 1]} : vector<16x128xf32> to vector<2x128xf32>
    %cst_20 = arith.constant dense<0.000000e+00> : vector<2x128xf32>
    %68 = tpu.matmul %65, %6, %cst_20 {dimension_numbers = #tpu.dot_dimension_numbers<[1], [0], [0], [1], [0, 0, 1, 1], [], []>} : vector<2x32xf32>, vector<32x128xf32>, vector<2x128xf32> -> vector<2x128xf32>
    %69 = arith.addf %67, %68 : vector<2x128xf32>
    %70 = vector.extract_strided_slice %69 {offsets = [0, 0], sizes = [2, 32], strides = [1, 1]} : vector<2x128xf32> to vector<2x32xf32>
    %71 = arith.negf %70 : vector<2x32xf32>
    %72 = math.exp %71 : vector<2x32xf32>
    %cst_21 = arith.constant 1.000000e+00 : f32
    %73 = vector.broadcast %cst_21 : f32 to vector<2x32xf32>
    %74 = arith.addf %73, %72 : vector<2x32xf32>
    %75 = arith.divf %73, %74 : vector<2x32xf32>
    %76 = vector.extract_strided_slice %69 {offsets = [0, 32], sizes = [2, 32], strides = [1, 1]} : vector<2x128xf32> to vector<2x32xf32>
    %77 = arith.negf %76 : vector<2x32xf32>
    %78 = math.exp %77 : vector<2x32xf32>
    %cst_22 = arith.constant 1.000000e+00 : f32
    %79 = vector.broadcast %cst_22 : f32 to vector<2x32xf32>
    %80 = arith.addf %79, %78 : vector<2x32xf32>
    %81 = arith.divf %79, %80 : vector<2x32xf32>
    %82 = vector.extract_strided_slice %69 {offsets = [0, 64], sizes = [2, 32], strides = [1, 1]} : vector<2x128xf32> to vector<2x32xf32>
    %83 = math.tanh %82 : vector<2x32xf32>
    %84 = vector.extract_strided_slice %69 {offsets = [0, 96], sizes = [2, 32], strides = [1, 1]} : vector<2x128xf32> to vector<2x32xf32>
    %85 = arith.negf %84 : vector<2x32xf32>
    %86 = math.exp %85 : vector<2x32xf32>
    %cst_23 = arith.constant 1.000000e+00 : f32
    %87 = vector.broadcast %cst_23 : f32 to vector<2x32xf32>
    %88 = arith.addf %87, %86 : vector<2x32xf32>
    %89 = arith.divf %87, %88 : vector<2x32xf32>
    %90 = arith.mulf %81, %63 : vector<2x32xf32>
    %91 = arith.mulf %75, %83 : vector<2x32xf32>
    %92 = arith.addf %90, %91 : vector<2x32xf32>
    %93 = math.tanh %92 : vector<2x32xf32>
    %94 = arith.mulf %89, %93 : vector<2x32xf32>
    %c4 = arith.constant 4 : index
    %c0_24 = arith.constant 0 : index
    %95 = vector.load %arg10[%c4, %c0_24] : memref<16x32xf32, #tpu.memory_space<vmem>>, vector<2x32xf32>
    tpu.vector_store %arg10[%c4, %c0_24], %94 {strides = array<i32>} : memref<16x32xf32, #tpu.memory_space<vmem>>, vector<2x32xf32>,
    %96 = vector.extract_strided_slice %5 {offsets = [6, 0], sizes = [2, 128], strides = [1, 1]} : vector<16x128xf32> to vector<2x128xf32>
    %cst_25 = arith.constant dense<0.000000e+00> : vector<2x128xf32>
    %97 = tpu.matmul %94, %6, %cst_25 {dimension_numbers = #tpu.dot_dimension_numbers<[1], [0], [0], [1], [0, 0, 1, 1], [], []>} : vector<2x32xf32>, vector<32x128xf32>, vector<2x128xf32> -> vector<2x128xf32>
    %98 = arith.addf %96, %97 : vector<2x128xf32>
    %99 = vector.extract_strided_slice %98 {offsets = [0, 0], sizes = [2, 32], strides = [1, 1]} : vector<2x128xf32> to vector<2x32xf32>
    %100 = arith.negf %99 : vector<2x32xf32>
    %101 = math.exp %100 : vector<2x32xf32>
    %cst_26 = arith.constant 1.000000e+00 : f32
    %102 = vector.broadcast %cst_26 : f32 to vector<2x32xf32>
    %103 = arith.addf %102, %101 : vector<2x32xf32>
    %104 = arith.divf %102, %103 : vector<2x32xf32>
    %105 = vector.extract_strided_slice %98 {offsets = [0, 32], sizes = [2, 32], strides = [1, 1]} : vector<2x128xf32> to vector<2x32xf32>
    %106 = arith.negf %105 : vector<2x32xf32>
    %107 = math.exp %106 : vector<2x32xf32>
    %cst_27 = arith.constant 1.000000e+00 : f32
    %108 = vector.broadcast %cst_27 : f32 to vector<2x32xf32>
    %109 = arith.addf %108, %107 : vector<2x32xf32>
    %110 = arith.divf %108, %109 : vector<2x32xf32>
    %111 = vector.extract_strided_slice %98 {offsets = [0, 64], sizes = [2, 32], strides = [1, 1]} : vector<2x128xf32> to vector<2x32xf32>
    %112 = math.tanh %111 : vector<2x32xf32>
    %113 = vector.extract_strided_slice %98 {offsets = [0, 96], sizes = [2, 32], strides = [1, 1]} : vector<2x128xf32> to vector<2x32xf32>
    %114 = arith.negf %113 : vector<2x32xf32>
    %115 = math.exp %114 : vector<2x32xf32>
    %cst_28 = arith.constant 1.000000e+00 : f32
    %116 = vector.broadcast %cst_28 : f32 to vector<2x32xf32>
    %117 = arith.addf %116, %115 : vector<2x32xf32>
    %118 = arith.divf %116, %117 : vector<2x32xf32>
    %119 = arith.mulf %110, %92 : vector<2x32xf32>
    %120 = arith.mulf %104, %112 : vector<2x32xf32>
    %121 = arith.addf %119, %120 : vector<2x32xf32>
    %122 = math.tanh %121 : vector<2x32xf32>
    %123 = arith.mulf %118, %122 : vector<2x32xf32>
    %c6 = arith.constant 6 : index
    %c0_29 = arith.constant 0 : index
    %124 = vector.load %arg10[%c6, %c0_29] : memref<16x32xf32, #tpu.memory_space<vmem>>, vector<2x32xf32>
    tpu.vector_store %arg10[%c6, %c0_29], %123 {strides = array<i32>} : memref<16x32xf32, #tpu.memory_space<vmem>>, vector<2x32xf32>,
    %125 = vector.extract_strided_slice %5 {offsets = [8, 0], sizes = [2, 128], strides = [1, 1]} : vector<16x128xf32> to vector<2x128xf32>
    %cst_30 = arith.constant dense<0.000000e+00> : vector<2x128xf32>
    %126 = tpu.matmul %123, %6, %cst_30 {dimension_numbers = #tpu.dot_dimension_numbers<[1], [0], [0], [1], [0, 0, 1, 1], [], []>} : vector<2x32xf32>, vector<32x128xf32>, vector<2x128xf32> -> vector<2x128xf32>
    %127 = arith.addf %125, %126 : vector<2x128xf32>
    %128 = vector.extract_strided_slice %127 {offsets = [0, 0], sizes = [2, 32], strides = [1, 1]} : vector<2x128xf32> to vector<2x32xf32>
    %129 = arith.negf %128 : vector<2x32xf32>
    %130 = math.exp %129 : vector<2x32xf32>
    %cst_31 = arith.constant 1.000000e+00 : f32
    %131 = vector.broadcast %cst_31 : f32 to vector<2x32xf32>
    %132 = arith.addf %131, %130 : vector<2x32xf32>
    %133 = arith.divf %131, %132 : vector<2x32xf32>
    %134 = vector.extract_strided_slice %127 {offsets = [0, 32], sizes = [2, 32], strides = [1, 1]} : vector<2x128xf32> to vector<2x32xf32>
    %135 = arith.negf %134 : vector<2x32xf32>
    %136 = math.exp %135 : vector<2x32xf32>
    %cst_32 = arith.constant 1.000000e+00 : f32
    %137 = vector.broadcast %cst_32 : f32 to vector<2x32xf32>
    %138 = arith.addf %137, %136 : vector<2x32xf32>
    %139 = arith.divf %137, %138 : vector<2x32xf32>
    %140 = vector.extract_strided_slice %127 {offsets = [0, 64], sizes = [2, 32], strides = [1, 1]} : vector<2x128xf32> to vector<2x32xf32>
    %141 = math.tanh %140 : vector<2x32xf32>
    %142 = vector.extract_strided_slice %127 {offsets = [0, 96], sizes = [2, 32], strides = [1, 1]} : vector<2x128xf32> to vector<2x32xf32>
    %143 = arith.negf %142 : vector<2x32xf32>
    %144 = math.exp %143 : vector<2x32xf32>
    %cst_33 = arith.constant 1.000000e+00 : f32
    %145 = vector.broadcast %cst_33 : f32 to vector<2x32xf32>
    %146 = arith.addf %145, %144 : vector<2x32xf32>
    %147 = arith.divf %145, %146 : vector<2x32xf32>
    %148 = arith.mulf %139, %121 : vector<2x32xf32>
    %149 = arith.mulf %133, %141 : vector<2x32xf32>
    %150 = arith.addf %148, %149 : vector<2x32xf32>
    %151 = math.tanh %150 : vector<2x32xf32>
    %152 = arith.mulf %147, %151 : vector<2x32xf32>
    %c8 = arith.constant 8 : index
    %c0_34 = arith.constant 0 : index
    %153 = vector.load %arg10[%c8, %c0_34] : memref<16x32xf32, #tpu.memory_space<vmem>>, vector<2x32xf32>
    tpu.vector_store %arg10[%c8, %c0_34], %152 {strides = array<i32>} : memref<16x32xf32, #tpu.memory_space<vmem>>, vector<2x32xf32>,
    %154 = vector.extract_strided_slice %5 {offsets = [10, 0], sizes = [2, 128], strides = [1, 1]} : vector<16x128xf32> to vector<2x128xf32>
    %cst_35 = arith.constant dense<0.000000e+00> : vector<2x128xf32>
    %155 = tpu.matmul %152, %6, %cst_35 {dimension_numbers = #tpu.dot_dimension_numbers<[1], [0], [0], [1], [0, 0, 1, 1], [], []>} : vector<2x32xf32>, vector<32x128xf32>, vector<2x128xf32> -> vector<2x128xf32>
    %156 = arith.addf %154, %155 : vector<2x128xf32>
    %157 = vector.extract_strided_slice %156 {offsets = [0, 0], sizes = [2, 32], strides = [1, 1]} : vector<2x128xf32> to vector<2x32xf32>
    %158 = arith.negf %157 : vector<2x32xf32>
    %159 = math.exp %158 : vector<2x32xf32>
    %cst_36 = arith.constant 1.000000e+00 : f32
    %160 = vector.broadcast %cst_36 : f32 to vector<2x32xf32>
    %161 = arith.addf %160, %159 : vector<2x32xf32>
    %162 = arith.divf %160, %161 : vector<2x32xf32>
    %163 = vector.extract_strided_slice %156 {offsets = [0, 32], sizes = [2, 32], strides = [1, 1]} : vector<2x128xf32> to vector<2x32xf32>
    %164 = arith.negf %163 : vector<2x32xf32>
    %165 = math.exp %164 : vector<2x32xf32>
    %cst_37 = arith.constant 1.000000e+00 : f32
    %166 = vector.broadcast %cst_37 : f32 to vector<2x32xf32>
    %167 = arith.addf %166, %165 : vector<2x32xf32>
    %168 = arith.divf %166, %167 : vector<2x32xf32>
    %169 = vector.extract_strided_slice %156 {offsets = [0, 64], sizes = [2, 32], strides = [1, 1]} : vector<2x128xf32> to vector<2x32xf32>
    %170 = math.tanh %169 : vector<2x32xf32>
    %171 = vector.extract_strided_slice %156 {offsets = [0, 96], sizes = [2, 32], strides = [1, 1]} : vector<2x128xf32> to vector<2x32xf32>
    %172 = arith.negf %171 : vector<2x32xf32>
    %173 = math.exp %172 : vector<2x32xf32>
    %cst_38 = arith.constant 1.000000e+00 : f32
    %174 = vector.broadcast %cst_38 : f32 to vector<2x32xf32>
    %175 = arith.addf %174, %173 : vector<2x32xf32>
    %176 = arith.divf %174, %175 : vector<2x32xf32>
    %177 = arith.mulf %168, %150 : vector<2x32xf32>
    %178 = arith.mulf %162, %170 : vector<2x32xf32>
    %179 = arith.addf %177, %178 : vector<2x32xf32>
    %180 = math.tanh %179 : vector<2x32xf32>
    %181 = arith.mulf %176, %180 : vector<2x32xf32>
    %c10 = arith.constant 10 : index
    %c0_39 = arith.constant 0 : index
    %182 = vector.load %arg10[%c10, %c0_39] : memref<16x32xf32, #tpu.memory_space<vmem>>, vector<2x32xf32>
    tpu.vector_store %arg10[%c10, %c0_39], %181 {strides = array<i32>} : memref<16x32xf32, #tpu.memory_space<vmem>>, vector<2x32xf32>,
    %183 = vector.extract_strided_slice %5 {offsets = [12, 0], sizes = [2, 128], strides = [1, 1]} : vector<16x128xf32> to vector<2x128xf32>
    %cst_40 = arith.constant dense<0.000000e+00> : vector<2x128xf32>
    %184 = tpu.matmul %181, %6, %cst_40 {dimension_numbers = #tpu.dot_dimension_numbers<[1], [0], [0], [1], [0, 0, 1, 1], [], []>} : vector<2x32xf32>, vector<32x128xf32>, vector<2x128xf32> -> vector<2x128xf32>
    %185 = arith.addf %183, %184 : vector<2x128xf32>
    %186 = vector.extract_strided_slice %185 {offsets = [0, 0], sizes = [2, 32], strides = [1, 1]} : vector<2x128xf32> to vector<2x32xf32>
    %187 = arith.negf %186 : vector<2x32xf32>
    %188 = math.exp %187 : vector<2x32xf32>
    %cst_41 = arith.constant 1.000000e+00 : f32
    %189 = vector.broadcast %cst_41 : f32 to vector<2x32xf32>
    %190 = arith.addf %189, %188 : vector<2x32xf32>
    %191 = arith.divf %189, %190 : vector<2x32xf32>
    %192 = vector.extract_strided_slice %185 {offsets = [0, 32], sizes = [2, 32], strides = [1, 1]} : vector<2x128xf32> to vector<2x32xf32>
    %193 = arith.negf %192 : vector<2x32xf32>
    %194 = math.exp %193 : vector<2x32xf32>
    %cst_42 = arith.constant 1.000000e+00 : f32
    %195 = vector.broadcast %cst_42 : f32 to vector<2x32xf32>
    %196 = arith.addf %195, %194 : vector<2x32xf32>
    %197 = arith.divf %195, %196 : vector<2x32xf32>
    %198 = vector.extract_strided_slice %185 {offsets = [0, 64], sizes = [2, 32], strides = [1, 1]} : vector<2x128xf32> to vector<2x32xf32>
    %199 = math.tanh %198 : vector<2x32xf32>
    %200 = vector.extract_strided_slice %185 {offsets = [0, 96], sizes = [2, 32], strides = [1, 1]} : vector<2x128xf32> to vector<2x32xf32>
    %201 = arith.negf %200 : vector<2x32xf32>
    %202 = math.exp %201 : vector<2x32xf32>
    %cst_43 = arith.constant 1.000000e+00 : f32
    %203 = vector.broadcast %cst_43 : f32 to vector<2x32xf32>
    %204 = arith.addf %203, %202 : vector<2x32xf32>
    %205 = arith.divf %203, %204 : vector<2x32xf32>
    %206 = arith.mulf %197, %179 : vector<2x32xf32>
    %207 = arith.mulf %191, %199 : vector<2x32xf32>
    %208 = arith.addf %206, %207 : vector<2x32xf32>
    %209 = math.tanh %208 : vector<2x32xf32>
    %210 = arith.mulf %205, %209 : vector<2x32xf32>
    %c12 = arith.constant 12 : index
    %c0_44 = arith.constant 0 : index
    %211 = vector.load %arg10[%c12, %c0_44] : memref<16x32xf32, #tpu.memory_space<vmem>>, vector<2x32xf32>
    tpu.vector_store %arg10[%c12, %c0_44], %210 {strides = array<i32>} : memref<16x32xf32, #tpu.memory_space<vmem>>, vector<2x32xf32>,
    %212 = vector.extract_strided_slice %5 {offsets = [14, 0], sizes = [2, 128], strides = [1, 1]} : vector<16x128xf32> to vector<2x128xf32>
    %cst_45 = arith.constant dense<0.000000e+00> : vector<2x128xf32>
    %213 = tpu.matmul %210, %6, %cst_45 {dimension_numbers = #tpu.dot_dimension_numbers<[1], [0], [0], [1], [0, 0, 1, 1], [], []>} : vector<2x32xf32>, vector<32x128xf32>, vector<2x128xf32> -> vector<2x128xf32>
    %214 = arith.addf %212, %213 : vector<2x128xf32>
    %215 = vector.extract_strided_slice %214 {offsets = [0, 0], sizes = [2, 32], strides = [1, 1]} : vector<2x128xf32> to vector<2x32xf32>
    %216 = arith.negf %215 : vector<2x32xf32>
    %217 = math.exp %216 : vector<2x32xf32>
    %cst_46 = arith.constant 1.000000e+00 : f32
    %218 = vector.broadcast %cst_46 : f32 to vector<2x32xf32>
    %219 = arith.addf %218, %217 : vector<2x32xf32>
    %220 = arith.divf %218, %219 : vector<2x32xf32>
    %221 = vector.extract_strided_slice %214 {offsets = [0, 32], sizes = [2, 32], strides = [1, 1]} : vector<2x128xf32> to vector<2x32xf32>
    %222 = arith.negf %221 : vector<2x32xf32>
    %223 = math.exp %222 : vector<2x32xf32>
    %cst_47 = arith.constant 1.000000e+00 : f32
    %224 = vector.broadcast %cst_47 : f32 to vector<2x32xf32>
    %225 = arith.addf %224, %223 : vector<2x32xf32>
    %226 = arith.divf %224, %225 : vector<2x32xf32>
    %227 = vector.extract_strided_slice %214 {offsets = [0, 64], sizes = [2, 32], strides = [1, 1]} : vector<2x128xf32> to vector<2x32xf32>
    %228 = math.tanh %227 : vector<2x32xf32>
    %229 = vector.extract_strided_slice %214 {offsets = [0, 96], sizes = [2, 32], strides = [1, 1]} : vector<2x128xf32> to vector<2x32xf32>
    %230 = arith.negf %229 : vector<2x32xf32>
    %231 = math.exp %230 : vector<2x32xf32>
    %cst_48 = arith.constant 1.000000e+00 : f32
    %232 = vector.broadcast %cst_48 : f32 to vector<2x32xf32>
    %233 = arith.addf %232, %231 : vector<2x32xf32>
    %234 = arith.divf %232, %233 : vector<2x32xf32>
    %235 = arith.mulf %226, %208 : vector<2x32xf32>
    %236 = arith.mulf %220, %228 : vector<2x32xf32>
    %237 = arith.addf %235, %236 : vector<2x32xf32>
    %238 = math.tanh %237 : vector<2x32xf32>
    %239 = arith.mulf %234, %238 : vector<2x32xf32>
    %c14 = arith.constant 14 : index
    %c0_49 = arith.constant 0 : index
    %240 = vector.load %arg10[%c14, %c0_49] : memref<16x32xf32, #tpu.memory_space<vmem>>, vector<2x32xf32>
    tpu.vector_store %arg10[%c14, %c0_49], %239 {strides = array<i32>} : memref<16x32xf32, #tpu.memory_space<vmem>>, vector<2x32xf32>,
    %c0_50 = arith.constant 0 : index
    %c0_51 = arith.constant 0 : index
    %241 = vector.load %arg10[%c0_50, %c0_51] : memref<16x32xf32, #tpu.memory_space<vmem>>, vector<16x32xf32>
    %c0_52 = arith.constant 0 : index
    %c0_53 = arith.constant 0 : index
    %242 = vector.load %arg4[%c0_52, %c0_53] : memref<32x128xf32, #tpu.memory_space<vmem>>, vector<32x128xf32>
    %cst_54 = arith.constant dense<0.000000e+00> : vector<16x128xf32>
    %243 = tpu.matmul %241, %242, %cst_54 {dimension_numbers = #tpu.dot_dimension_numbers<[1], [0], [0], [1], [0, 0, 1, 1], [], []>} : vector<16x32xf32>, vector<32x128xf32>, vector<16x128xf32> -> vector<16x128xf32>
    %c0_55 = arith.constant 0 : index
    %c0_56 = arith.constant 0 : index
    %244 = vector.load %arg6[%c0_55, %c0_56] : memref<1x128xf32, #tpu.memory_space<vmem>>, vector<1x128xf32>
    %245 = vector.broadcast %244 : vector<1x128xf32> to vector<16x128xf32>
    %246 = arith.addf %243, %245 : vector<16x128xf32>
    %c0_57 = arith.constant 0 : index
    %c0_58 = arith.constant 0 : index
    %247 = vector.load %arg5[%c0_57, %c0_58] : memref<32x128xf32, #tpu.memory_space<vmem>>, vector<32x128xf32>
    %cst_59 = arith.constant 0.000000e+00 : f32
    %248 = vector.broadcast %cst_59 : f32 to vector<2x32xf32>
    %cst_60 = arith.constant 0.000000e+00 : f32
    %249 = vector.broadcast %cst_60 : f32 to vector<2x32xf32>
    %250 = vector.extract_strided_slice %246 {offsets = [0, 0], sizes = [2, 128], strides = [1, 1]} : vector<16x128xf32> to vector<2x128xf32>
    %cst_61 = arith.constant dense<0.000000e+00> : vector<2x128xf32>
    %251 = tpu.matmul %248, %247, %cst_61 {dimension_numbers = #tpu.dot_dimension_numbers<[1], [0], [0], [1], [0, 0, 1, 1], [], []>} : vector<2x32xf32>, vector<32x128xf32>, vector<2x128xf32> -> vector<2x128xf32>
    %252 = arith.addf %250, %251 : vector<2x128xf32>
    %253 = vector.extract_strided_slice %252 {offsets = [0, 0], sizes = [2, 32], strides = [1, 1]} : vector<2x128xf32> to vector<2x32xf32>
    %254 = arith.negf %253 : vector<2x32xf32>
    %255 = math.exp %254 : vector<2x32xf32>
    %cst_62 = arith.constant 1.000000e+00 : f32
    %256 = vector.broadcast %cst_62 : f32 to vector<2x32xf32>
    %257 = arith.addf %256, %255 : vector<2x32xf32>
    %258 = arith.divf %256, %257 : vector<2x32xf32>
    %259 = vector.extract_strided_slice %252 {offsets = [0, 32], sizes = [2, 32], strides = [1, 1]} : vector<2x128xf32> to vector<2x32xf32>
    %260 = arith.negf %259 : vector<2x32xf32>
    %261 = math.exp %260 : vector<2x32xf32>
    %cst_63 = arith.constant 1.000000e+00 : f32
    %262 = vector.broadcast %cst_63 : f32 to vector<2x32xf32>
    %263 = arith.addf %262, %261 : vector<2x32xf32>
    %264 = arith.divf %262, %263 : vector<2x32xf32>
    %265 = vector.extract_strided_slice %252 {offsets = [0, 64], sizes = [2, 32], strides = [1, 1]} : vector<2x128xf32> to vector<2x32xf32>
    %266 = math.tanh %265 : vector<2x32xf32>
    %267 = vector.extract_strided_slice %252 {offsets = [0, 96], sizes = [2, 32], strides = [1, 1]} : vector<2x128xf32> to vector<2x32xf32>
    %268 = arith.negf %267 : vector<2x32xf32>
    %269 = math.exp %268 : vector<2x32xf32>
    %cst_64 = arith.constant 1.000000e+00 : f32
    %270 = vector.broadcast %cst_64 : f32 to vector<2x32xf32>
    %271 = arith.addf %270, %269 : vector<2x32xf32>
    %272 = arith.divf %270, %271 : vector<2x32xf32>
    %273 = arith.mulf %264, %249 : vector<2x32xf32>
    %274 = arith.mulf %258, %266 : vector<2x32xf32>
    %275 = arith.addf %273, %274 : vector<2x32xf32>
    %276 = math.tanh %275 : vector<2x32xf32>
    %277 = arith.mulf %272, %276 : vector<2x32xf32>
    %278 = vector.extract_strided_slice %246 {offsets = [2, 0], sizes = [2, 128], strides = [1, 1]} : vector<16x128xf32> to vector<2x128xf32>
    %cst_65 = arith.constant dense<0.000000e+00> : vector<2x128xf32>
    %279 = tpu.matmul %277, %247, %cst_65 {dimension_numbers = #tpu.dot_dimension_numbers<[1], [0], [0], [1], [0, 0, 1, 1], [], []>} : vector<2x32xf32>, vector<32x128xf32>, vector<2x128xf32> -> vector<2x128xf32>
    %280 = arith.addf %278, %279 : vector<2x128xf32>
    %281 = vector.extract_strided_slice %280 {offsets = [0, 0], sizes = [2, 32], strides = [1, 1]} : vector<2x128xf32> to vector<2x32xf32>
    %282 = arith.negf %281 : vector<2x32xf32>
    %283 = math.exp %282 : vector<2x32xf32>
    %cst_66 = arith.constant 1.000000e+00 : f32
    %284 = vector.broadcast %cst_66 : f32 to vector<2x32xf32>
    %285 = arith.addf %284, %283 : vector<2x32xf32>
    %286 = arith.divf %284, %285 : vector<2x32xf32>
    %287 = vector.extract_strided_slice %280 {offsets = [0, 32], sizes = [2, 32], strides = [1, 1]} : vector<2x128xf32> to vector<2x32xf32>
    %288 = arith.negf %287 : vector<2x32xf32>
    %289 = math.exp %288 : vector<2x32xf32>
    %cst_67 = arith.constant 1.000000e+00 : f32
    %290 = vector.broadcast %cst_67 : f32 to vector<2x32xf32>
    %291 = arith.addf %290, %289 : vector<2x32xf32>
    %292 = arith.divf %290, %291 : vector<2x32xf32>
    %293 = vector.extract_strided_slice %280 {offsets = [0, 64], sizes = [2, 32], strides = [1, 1]} : vector<2x128xf32> to vector<2x32xf32>
    %294 = math.tanh %293 : vector<2x32xf32>
    %295 = vector.extract_strided_slice %280 {offsets = [0, 96], sizes = [2, 32], strides = [1, 1]} : vector<2x128xf32> to vector<2x32xf32>
    %296 = arith.negf %295 : vector<2x32xf32>
    %297 = math.exp %296 : vector<2x32xf32>
    %cst_68 = arith.constant 1.000000e+00 : f32
    %298 = vector.broadcast %cst_68 : f32 to vector<2x32xf32>
    %299 = arith.addf %298, %297 : vector<2x32xf32>
    %300 = arith.divf %298, %299 : vector<2x32xf32>
    %301 = arith.mulf %292, %275 : vector<2x32xf32>
    %302 = arith.mulf %286, %294 : vector<2x32xf32>
    %303 = arith.addf %301, %302 : vector<2x32xf32>
    %304 = math.tanh %303 : vector<2x32xf32>
    %305 = arith.mulf %300, %304 : vector<2x32xf32>
    %306 = vector.extract_strided_slice %246 {offsets = [4, 0], sizes = [2, 128], strides = [1, 1]} : vector<16x128xf32> to vector<2x128xf32>
    %cst_69 = arith.constant dense<0.000000e+00> : vector<2x128xf32>
    %307 = tpu.matmul %305, %247, %cst_69 {dimension_numbers = #tpu.dot_dimension_numbers<[1], [0], [0], [1], [0, 0, 1, 1], [], []>} : vector<2x32xf32>, vector<32x128xf32>, vector<2x128xf32> -> vector<2x128xf32>
    %308 = arith.addf %306, %307 : vector<2x128xf32>
    %309 = vector.extract_strided_slice %308 {offsets = [0, 0], sizes = [2, 32], strides = [1, 1]} : vector<2x128xf32> to vector<2x32xf32>
    %310 = arith.negf %309 : vector<2x32xf32>
    %311 = math.exp %310 : vector<2x32xf32>
    %cst_70 = arith.constant 1.000000e+00 : f32
    %312 = vector.broadcast %cst_70 : f32 to vector<2x32xf32>
    %313 = arith.addf %312, %311 : vector<2x32xf32>
    %314 = arith.divf %312, %313 : vector<2x32xf32>
    %315 = vector.extract_strided_slice %308 {offsets = [0, 32], sizes = [2, 32], strides = [1, 1]} : vector<2x128xf32> to vector<2x32xf32>
    %316 = arith.negf %315 : vector<2x32xf32>
    %317 = math.exp %316 : vector<2x32xf32>
    %cst_71 = arith.constant 1.000000e+00 : f32
    %318 = vector.broadcast %cst_71 : f32 to vector<2x32xf32>
    %319 = arith.addf %318, %317 : vector<2x32xf32>
    %320 = arith.divf %318, %319 : vector<2x32xf32>
    %321 = vector.extract_strided_slice %308 {offsets = [0, 64], sizes = [2, 32], strides = [1, 1]} : vector<2x128xf32> to vector<2x32xf32>
    %322 = math.tanh %321 : vector<2x32xf32>
    %323 = vector.extract_strided_slice %308 {offsets = [0, 96], sizes = [2, 32], strides = [1, 1]} : vector<2x128xf32> to vector<2x32xf32>
    %324 = arith.negf %323 : vector<2x32xf32>
    %325 = math.exp %324 : vector<2x32xf32>
    %cst_72 = arith.constant 1.000000e+00 : f32
    %326 = vector.broadcast %cst_72 : f32 to vector<2x32xf32>
    %327 = arith.addf %326, %325 : vector<2x32xf32>
    %328 = arith.divf %326, %327 : vector<2x32xf32>
    %329 = arith.mulf %320, %303 : vector<2x32xf32>
    %330 = arith.mulf %314, %322 : vector<2x32xf32>
    %331 = arith.addf %329, %330 : vector<2x32xf32>
    %332 = math.tanh %331 : vector<2x32xf32>
    %333 = arith.mulf %328, %332 : vector<2x32xf32>
    %334 = vector.extract_strided_slice %246 {offsets = [6, 0], sizes = [2, 128], strides = [1, 1]} : vector<16x128xf32> to vector<2x128xf32>
    %cst_73 = arith.constant dense<0.000000e+00> : vector<2x128xf32>
    %335 = tpu.matmul %333, %247, %cst_73 {dimension_numbers = #tpu.dot_dimension_numbers<[1], [0], [0], [1], [0, 0, 1, 1], [], []>} : vector<2x32xf32>, vector<32x128xf32>, vector<2x128xf32> -> vector<2x128xf32>
    %336 = arith.addf %334, %335 : vector<2x128xf32>
    %337 = vector.extract_strided_slice %336 {offsets = [0, 0], sizes = [2, 32], strides = [1, 1]} : vector<2x128xf32> to vector<2x32xf32>
    %338 = arith.negf %337 : vector<2x32xf32>
    %339 = math.exp %338 : vector<2x32xf32>
    %cst_74 = arith.constant 1.000000e+00 : f32
    %340 = vector.broadcast %cst_74 : f32 to vector<2x32xf32>
    %341 = arith.addf %340, %339 : vector<2x32xf32>
    %342 = arith.divf %340, %341 : vector<2x32xf32>
    %343 = vector.extract_strided_slice %336 {offsets = [0, 32], sizes = [2, 32], strides = [1, 1]} : vector<2x128xf32> to vector<2x32xf32>
    %344 = arith.negf %343 : vector<2x32xf32>
    %345 = math.exp %344 : vector<2x32xf32>
    %cst_75 = arith.constant 1.000000e+00 : f32
    %346 = vector.broadcast %cst_75 : f32 to vector<2x32xf32>
    %347 = arith.addf %346, %345 : vector<2x32xf32>
    %348 = arith.divf %346, %347 : vector<2x32xf32>
    %349 = vector.extract_strided_slice %336 {offsets = [0, 64], sizes = [2, 32], strides = [1, 1]} : vector<2x128xf32> to vector<2x32xf32>
    %350 = math.tanh %349 : vector<2x32xf32>
    %351 = vector.extract_strided_slice %336 {offsets = [0, 96], sizes = [2, 32], strides = [1, 1]} : vector<2x128xf32> to vector<2x32xf32>
    %352 = arith.negf %351 : vector<2x32xf32>
    %353 = math.exp %352 : vector<2x32xf32>
    %cst_76 = arith.constant 1.000000e+00 : f32
    %354 = vector.broadcast %cst_76 : f32 to vector<2x32xf32>
    %355 = arith.addf %354, %353 : vector<2x32xf32>
    %356 = arith.divf %354, %355 : vector<2x32xf32>
    %357 = arith.mulf %348, %331 : vector<2x32xf32>
    %358 = arith.mulf %342, %350 : vector<2x32xf32>
    %359 = arith.addf %357, %358 : vector<2x32xf32>
    %360 = math.tanh %359 : vector<2x32xf32>
    %361 = arith.mulf %356, %360 : vector<2x32xf32>
    %362 = vector.extract_strided_slice %246 {offsets = [8, 0], sizes = [2, 128], strides = [1, 1]} : vector<16x128xf32> to vector<2x128xf32>
    %cst_77 = arith.constant dense<0.000000e+00> : vector<2x128xf32>
    %363 = tpu.matmul %361, %247, %cst_77 {dimension_numbers = #tpu.dot_dimension_numbers<[1], [0], [0], [1], [0, 0, 1, 1], [], []>} : vector<2x32xf32>, vector<32x128xf32>, vector<2x128xf32> -> vector<2x128xf32>
    %364 = arith.addf %362, %363 : vector<2x128xf32>
    %365 = vector.extract_strided_slice %364 {offsets = [0, 0], sizes = [2, 32], strides = [1, 1]} : vector<2x128xf32> to vector<2x32xf32>
    %366 = arith.negf %365 : vector<2x32xf32>
    %367 = math.exp %366 : vector<2x32xf32>
    %cst_78 = arith.constant 1.000000e+00 : f32
    %368 = vector.broadcast %cst_78 : f32 to vector<2x32xf32>
    %369 = arith.addf %368, %367 : vector<2x32xf32>
    %370 = arith.divf %368, %369 : vector<2x32xf32>
    %371 = vector.extract_strided_slice %364 {offsets = [0, 32], sizes = [2, 32], strides = [1, 1]} : vector<2x128xf32> to vector<2x32xf32>
    %372 = arith.negf %371 : vector<2x32xf32>
    %373 = math.exp %372 : vector<2x32xf32>
    %cst_79 = arith.constant 1.000000e+00 : f32
    %374 = vector.broadcast %cst_79 : f32 to vector<2x32xf32>
    %375 = arith.addf %374, %373 : vector<2x32xf32>
    %376 = arith.divf %374, %375 : vector<2x32xf32>
    %377 = vector.extract_strided_slice %364 {offsets = [0, 64], sizes = [2, 32], strides = [1, 1]} : vector<2x128xf32> to vector<2x32xf32>
    %378 = math.tanh %377 : vector<2x32xf32>
    %379 = vector.extract_strided_slice %364 {offsets = [0, 96], sizes = [2, 32], strides = [1, 1]} : vector<2x128xf32> to vector<2x32xf32>
    %380 = arith.negf %379 : vector<2x32xf32>
    %381 = math.exp %380 : vector<2x32xf32>
    %cst_80 = arith.constant 1.000000e+00 : f32
    %382 = vector.broadcast %cst_80 : f32 to vector<2x32xf32>
    %383 = arith.addf %382, %381 : vector<2x32xf32>
    %384 = arith.divf %382, %383 : vector<2x32xf32>
    %385 = arith.mulf %376, %359 : vector<2x32xf32>
    %386 = arith.mulf %370, %378 : vector<2x32xf32>
    %387 = arith.addf %385, %386 : vector<2x32xf32>
    %388 = math.tanh %387 : vector<2x32xf32>
    %389 = arith.mulf %384, %388 : vector<2x32xf32>
    %390 = vector.extract_strided_slice %246 {offsets = [10, 0], sizes = [2, 128], strides = [1, 1]} : vector<16x128xf32> to vector<2x128xf32>
    %cst_81 = arith.constant dense<0.000000e+00> : vector<2x128xf32>
    %391 = tpu.matmul %389, %247, %cst_81 {dimension_numbers = #tpu.dot_dimension_numbers<[1], [0], [0], [1], [0, 0, 1, 1], [], []>} : vector<2x32xf32>, vector<32x128xf32>, vector<2x128xf32> -> vector<2x128xf32>
    %392 = arith.addf %390, %391 : vector<2x128xf32>
    %393 = vector.extract_strided_slice %392 {offsets = [0, 0], sizes = [2, 32], strides = [1, 1]} : vector<2x128xf32> to vector<2x32xf32>
    %394 = arith.negf %393 : vector<2x32xf32>
    %395 = math.exp %394 : vector<2x32xf32>
    %cst_82 = arith.constant 1.000000e+00 : f32
    %396 = vector.broadcast %cst_82 : f32 to vector<2x32xf32>
    %397 = arith.addf %396, %395 : vector<2x32xf32>
    %398 = arith.divf %396, %397 : vector<2x32xf32>
    %399 = vector.extract_strided_slice %392 {offsets = [0, 32], sizes = [2, 32], strides = [1, 1]} : vector<2x128xf32> to vector<2x32xf32>
    %400 = arith.negf %399 : vector<2x32xf32>
    %401 = math.exp %400 : vector<2x32xf32>
    %cst_83 = arith.constant 1.000000e+00 : f32
    %402 = vector.broadcast %cst_83 : f32 to vector<2x32xf32>
    %403 = arith.addf %402, %401 : vector<2x32xf32>
    %404 = arith.divf %402, %403 : vector<2x32xf32>
    %405 = vector.extract_strided_slice %392 {offsets = [0, 64], sizes = [2, 32], strides = [1, 1]} : vector<2x128xf32> to vector<2x32xf32>
    %406 = math.tanh %405 : vector<2x32xf32>
    %407 = vector.extract_strided_slice %392 {offsets = [0, 96], sizes = [2, 32], strides = [1, 1]} : vector<2x128xf32> to vector<2x32xf32>
    %408 = arith.negf %407 : vector<2x32xf32>
    %409 = math.exp %408 : vector<2x32xf32>
    %cst_84 = arith.constant 1.000000e+00 : f32
    %410 = vector.broadcast %cst_84 : f32 to vector<2x32xf32>
    %411 = arith.addf %410, %409 : vector<2x32xf32>
    %412 = arith.divf %410, %411 : vector<2x32xf32>
    %413 = arith.mulf %404, %387 : vector<2x32xf32>
    %414 = arith.mulf %398, %406 : vector<2x32xf32>
    %415 = arith.addf %413, %414 : vector<2x32xf32>
    %416 = math.tanh %415 : vector<2x32xf32>
    %417 = arith.mulf %412, %416 : vector<2x32xf32>
    %418 = vector.extract_strided_slice %246 {offsets = [12, 0], sizes = [2, 128], strides = [1, 1]} : vector<16x128xf32> to vector<2x128xf32>
    %cst_85 = arith.constant dense<0.000000e+00> : vector<2x128xf32>
    %419 = tpu.matmul %417, %247, %cst_85 {dimension_numbers = #tpu.dot_dimension_numbers<[1], [0], [0], [1], [0, 0, 1, 1], [], []>} : vector<2x32xf32>, vector<32x128xf32>, vector<2x128xf32> -> vector<2x128xf32>
    %420 = arith.addf %418, %419 : vector<2x128xf32>
    %421 = vector.extract_strided_slice %420 {offsets = [0, 0], sizes = [2, 32], strides = [1, 1]} : vector<2x128xf32> to vector<2x32xf32>
    %422 = arith.negf %421 : vector<2x32xf32>
    %423 = math.exp %422 : vector<2x32xf32>
    %cst_86 = arith.constant 1.000000e+00 : f32
    %424 = vector.broadcast %cst_86 : f32 to vector<2x32xf32>
    %425 = arith.addf %424, %423 : vector<2x32xf32>
    %426 = arith.divf %424, %425 : vector<2x32xf32>
    %427 = vector.extract_strided_slice %420 {offsets = [0, 32], sizes = [2, 32], strides = [1, 1]} : vector<2x128xf32> to vector<2x32xf32>
    %428 = arith.negf %427 : vector<2x32xf32>
    %429 = math.exp %428 : vector<2x32xf32>
    %cst_87 = arith.constant 1.000000e+00 : f32
    %430 = vector.broadcast %cst_87 : f32 to vector<2x32xf32>
    %431 = arith.addf %430, %429 : vector<2x32xf32>
    %432 = arith.divf %430, %431 : vector<2x32xf32>
    %433 = vector.extract_strided_slice %420 {offsets = [0, 64], sizes = [2, 32], strides = [1, 1]} : vector<2x128xf32> to vector<2x32xf32>
    %434 = math.tanh %433 : vector<2x32xf32>
    %435 = vector.extract_strided_slice %420 {offsets = [0, 96], sizes = [2, 32], strides = [1, 1]} : vector<2x128xf32> to vector<2x32xf32>
    %436 = arith.negf %435 : vector<2x32xf32>
    %437 = math.exp %436 : vector<2x32xf32>
    %cst_88 = arith.constant 1.000000e+00 : f32
    %438 = vector.broadcast %cst_88 : f32 to vector<2x32xf32>
    %439 = arith.addf %438, %437 : vector<2x32xf32>
    %440 = arith.divf %438, %439 : vector<2x32xf32>
    %441 = arith.mulf %432, %415 : vector<2x32xf32>
    %442 = arith.mulf %426, %434 : vector<2x32xf32>
    %443 = arith.addf %441, %442 : vector<2x32xf32>
    %444 = math.tanh %443 : vector<2x32xf32>
    %445 = arith.mulf %440, %444 : vector<2x32xf32>
    %446 = vector.extract_strided_slice %246 {offsets = [14, 0], sizes = [2, 128], strides = [1, 1]} : vector<16x128xf32> to vector<2x128xf32>
    %cst_89 = arith.constant dense<0.000000e+00> : vector<2x128xf32>
    %447 = tpu.matmul %445, %247, %cst_89 {dimension_numbers = #tpu.dot_dimension_numbers<[1], [0], [0], [1], [0, 0, 1, 1], [], []>} : vector<2x32xf32>, vector<32x128xf32>, vector<2x128xf32> -> vector<2x128xf32>
    %448 = arith.addf %446, %447 : vector<2x128xf32>
    %449 = vector.extract_strided_slice %448 {offsets = [0, 0], sizes = [2, 32], strides = [1, 1]} : vector<2x128xf32> to vector<2x32xf32>
    %450 = arith.negf %449 : vector<2x32xf32>
    %451 = math.exp %450 : vector<2x32xf32>
    %cst_90 = arith.constant 1.000000e+00 : f32
    %452 = vector.broadcast %cst_90 : f32 to vector<2x32xf32>
    %453 = arith.addf %452, %451 : vector<2x32xf32>
    %454 = arith.divf %452, %453 : vector<2x32xf32>
    %455 = vector.extract_strided_slice %448 {offsets = [0, 32], sizes = [2, 32], strides = [1, 1]} : vector<2x128xf32> to vector<2x32xf32>
    %456 = arith.negf %455 : vector<2x32xf32>
    %457 = math.exp %456 : vector<2x32xf32>
    %cst_91 = arith.constant 1.000000e+00 : f32
    %458 = vector.broadcast %cst_91 : f32 to vector<2x32xf32>
    %459 = arith.addf %458, %457 : vector<2x32xf32>
    %460 = arith.divf %458, %459 : vector<2x32xf32>
    %461 = vector.extract_strided_slice %448 {offsets = [0, 64], sizes = [2, 32], strides = [1, 1]} : vector<2x128xf32> to vector<2x32xf32>
    %462 = math.tanh %461 : vector<2x32xf32>
    %463 = vector.extract_strided_slice %448 {offsets = [0, 96], sizes = [2, 32], strides = [1, 1]} : vector<2x128xf32> to vector<2x32xf32>
    %464 = arith.negf %463 : vector<2x32xf32>
    %465 = math.exp %464 : vector<2x32xf32>
    %cst_92 = arith.constant 1.000000e+00 : f32
    %466 = vector.broadcast %cst_92 : f32 to vector<2x32xf32>
    %467 = arith.addf %466, %465 : vector<2x32xf32>
    %468 = arith.divf %466, %467 : vector<2x32xf32>
    %469 = arith.mulf %460, %443 : vector<2x32xf32>
    %470 = arith.mulf %454, %462 : vector<2x32xf32>
    %471 = arith.addf %469, %470 : vector<2x32xf32>
    %472 = math.tanh %471 : vector<2x32xf32>
    %473 = arith.mulf %468, %472 : vector<2x32xf32>
    %c0_93 = arith.constant 0 : index
    %c0_94 = arith.constant 0 : index
    %474 = vector.load %arg7[%c0_93, %c0_94] : memref<32x4xf32, #tpu.memory_space<vmem>>, vector<32x4xf32>
    %cst_95 = arith.constant dense<0.000000e+00> : vector<2x4xf32>
    %475 = tpu.matmul %473, %474, %cst_95 {dimension_numbers = #tpu.dot_dimension_numbers<[1], [0], [0], [1], [0, 0, 1, 1], [], []>} : vector<2x32xf32>, vector<32x4xf32>, vector<2x4xf32> -> vector<2x4xf32>
    %c0_96 = arith.constant 0 : index
    %c0_97 = arith.constant 0 : index
    %476 = vector.load %arg8[%c0_96, %c0_97] : memref<1x4xf32, #tpu.memory_space<vmem>>, vector<1x4xf32>
    %477 = vector.broadcast %476 : vector<1x4xf32> to vector<2x4xf32>
    %478 = arith.addf %475, %477 : vector<2x4xf32>
    %c0_98 = arith.constant 0 : index
    %c0_99 = arith.constant 0 : index
    %479 = vector.load %arg9[%c0_98, %c0_99] : memref<2x4xf32, #tpu.memory_space<vmem>>, vector<2x4xf32>
    tpu.vector_store %arg9[%c0_98, %c0_99], %478 {strides = array<i32>} : memref<2x4xf32, #tpu.memory_space<vmem>>, vector<2x4xf32>,
    return
  }
}

</mosaic_0001>

<llo_original>
// kernel: tpu_custom_call.1
$region0: #{tpu_custom_call.1}
  #allocation0 [shape = 'u32[]', space=smem, size = 0x4, offset = 0x4, fixed_abs, tag = 'smem constant byte address 0x4 - core index']
  #allocation1 [shape = 'u32[144,128]{1,0:T(1,128)}', space=vmem, size = 0x12000, scoped, tag = 'internal scratch']
  #allocation2 [shape = 'f32[16,32]{1,0:T(8,128)}', space=vmem, size = 0x2000, scoped, tag = 'scratch operand']
  %s0 = inlined_call_operand.hbm [shape: f32[16,16], index: 0, kind: input, shape index: {}]
  %s1 = inlined_call_operand.hbm [shape: f32[16,128], index: 1, kind: input, shape index: {}]
  %s2 = inlined_call_operand.vmem [shape: f32[32,128], index: 2, kind: input, shape index: {}]
  %s3 = inlined_call_operand.vmem [shape: f32[1,128], index: 3, kind: input, shape index: {}]
  %s4 = inlined_call_operand.hbm [shape: f32[32,128], index: 4, kind: input, shape index: {}]
  %s5 = inlined_call_operand.hbm [shape: f32[32,128], index: 5, kind: input, shape index: {}]
  %s6 = inlined_call_operand.vmem [shape: f32[1,128], index: 6, kind: input, shape index: {}]
  %s7 = inlined_call_operand.vmem [shape: f32[32,4], index: 7, kind: input, shape index: {}]
  %s8 = inlined_call_operand.vmem [shape: f32[1,4], index: 8, kind: input, shape index: {}]
  %s9 = inlined_call_operand.hbm [shape: f32[2,4], index: 9, kind: output, shape index: {}]
  %s10 = sld [smem:[#allocation0]]
  $region62: #{tpu_custom_call.1} parent=0
    _
  %s12 = ssub.s32 1, %s10
  %s13 = scalar_select 0, %s12, %s10
  $region1: #{tpu_custom_call.1} parent=0
    #allocation3 [shape = 'u8[8192]{0}', space=vmem, size = 0x2000, scoped, tag = 'input window, operand 0, single buffered']
    #allocation4 [shape = 's32[1]{0}', space=sflag, size = 0x4, scoped, tag = 'scoped memory for tpu_custom_call.1']
    #allocation5 [shape = 's32[1]{0}', space=sflag, size = 0x4, scoped, tag = 'scoped memory for tpu_custom_call.1']
    #allocation6 [shape = 'u8[8192]{0}', space=vmem, size = 0x2000, scoped, tag = 'input window, operand 1, single buffered']
    #allocation7 [shape = 's32[1]{0}', space=sflag, size = 0x4, scoped, tag = 'scoped memory for tpu_custom_call.1']
    #allocation8 [shape = 'u8[16384]{0}', space=vmem, size = 0x4000, scoped, tag = 'input window, operand 4, single buffered']
    #allocation9 [shape = 'u8[16384]{0}', space=vmem, size = 0x4000, scoped, tag = 'input window, operand 5, single buffered']
    #allocation10 [shape = 's32[1]{0}', space=sflag, size = 0x4, scoped, tag = 'scoped memory for tpu_custom_call.1']
    #allocation11 [shape = 'u8[1024]{0}', space=vmem, size = 0x400, scoped, tag = 'output window, operand 0, single buffered']
    %14 = vsyncpa [#allocation4], 0
    %15 = vsyncpa [#allocation7], 0
    %16 = vsyncpa [#allocation10], 0
    %17 = vsyncpa [#allocation5], 0
    // Predicated region
    $region2: #{tpu_custom_call.1} parent=1 // pred_check
      _
    $region3: #{tpu_custom_call.1} parent=1 // pred_check_branch
      %19 = sbr.rel (0) target = $region5
    $region4: #{tpu_custom_call.1} parent=1 // pred_region
      %s21 = ssub.s32 256, 256
      %22 = vsyncadd [#allocation4], %s21
      %s23 = sshll.u32 [#allocation3], 4
      %s24 = int_to_ptr.vmem [resolvable:$true] %s23
      %29 = dma.hbm_to_vmem [thread:$0]  %s0, 256, %s24, [#allocation4], 128, 128, 8
    $region5: #{tpu_custom_call.1} parent=1 // pred_fallthru
      _
    // Predicated region
    $region6: #{tpu_custom_call.1} parent=1 // pred_check
      _
    $region7: #{tpu_custom_call.1} parent=1 // pred_check_branch
      %31 = sbr.rel (0) target = $region9
    $region8: #{tpu_custom_call.1} parent=1 // pred_region
      %s33 = ssub.s32 256, 256
      %34 = vsyncadd [#allocation7], %s33
      %s35 = sshll.u32 [#allocation6], 4
      %s36 = int_to_ptr.vmem [resolvable:$true] %s35
      %41 = dma.hbm_to_vmem [thread:$0]  %s1, 256, %s36, [#allocation7], 128, 128, 8
    $region9: #{tpu_custom_call.1} parent=1 // pred_fallthru
      _
    // Predicated region
    $region10: #{tpu_custom_call.1} parent=1 // pred_check
      _
    $region11: #{tpu_custom_call.1} parent=1 // pred_check_branch
      %43 = sbr.rel (0) target = $region13
    $region12: #{tpu_custom_call.1} parent=1 // pred_region
      _
    $region13: #{tpu_custom_call.1} parent=1 // pred_fallthru
      _
    // Predicated region
    $region14: #{tpu_custom_call.1} parent=1 // pred_check
      _
    $region15: #{tpu_custom_call.1} parent=1 // pred_check_branch
      %45 = sbr.rel (0) target = $region17
    $region16: #{tpu_custom_call.1} parent=1 // pred_region
      _
    $region17: #{tpu_custom_call.1} parent=1 // pred_fallthru
      _
    // Predicated region
    $region18: #{tpu_custom_call.1} parent=1 // pred_check
      _
    $region19: #{tpu_custom_call.1} parent=1 // pred_check_branch
      %47 = sbr.rel (0) target = $region21
    $region20: #{tpu_custom_call.1} parent=1 // pred_region
      %s49 = ssub.s32 512, 512
      %50 = vsyncadd [#allocation7], %s49
      %s51 = sshll.u32 [#allocation8], 4
      %s52 = int_to_ptr.vmem [resolvable:$true] %s51
      %57 = dma.hbm_to_vmem [thread:$0]  %s4, 512, %s52, [#allocation7], 128, 128, 8
    $region21: #{tpu_custom_call.1} parent=1 // pred_fallthru
      _
    // Predicated region
    $region22: #{tpu_custom_call.1} parent=1 // pred_check
      _
    $region23: #{tpu_custom_call.1} parent=1 // pred_check_branch
      %59 = sbr.rel (0) target = $region25
    $region24: #{tpu_custom_call.1} parent=1 // pred_region
      %s61 = ssub.s32 512, 512
      %62 = vsyncadd [#allocation10], %s61
      %s63 = sshll.u32 [#allocation9], 4
      %s64 = int_to_ptr.vmem [resolvable:$true] %s63
      %69 = dma.hbm_to_vmem [thread:$0]  %s5, 512, %s64, [#allocation10], 128, 128, 8
    $region25: #{tpu_custom_call.1} parent=1 // pred_fallthru
      _
    // Predicated region
    $region26: #{tpu_custom_call.1} parent=1 // pred_check
      _
    $region27: #{tpu_custom_call.1} parent=1 // pred_check_branch
      %71 = sbr.rel (0) target = $region29
    $region28: #{tpu_custom_call.1} parent=1 // pred_region
      _
    $region29: #{tpu_custom_call.1} parent=1 // pred_fallthru
      _
    // Predicated region
    $region30: #{tpu_custom_call.1} parent=1 // pred_check
      _
    $region31: #{tpu_custom_call.1} parent=1 // pred_check_branch
      %73 = sbr.rel (0) target = $region33
    $region32: #{tpu_custom_call.1} parent=1 // pred_region
      _
    $region33: #{tpu_custom_call.1} parent=1 // pred_fallthru
      _
    // Predicated region
    $region34: #{tpu_custom_call.1} parent=1 // pred_check
      _
    $region35: #{tpu_custom_call.1} parent=1 // pred_check_branch
      %75 = sbr.rel (0) target = $region37
    $region36: #{tpu_custom_call.1} parent=1 // pred_region
      _
    $region37: #{tpu_custom_call.1} parent=1 // pred_fallthru
      _
    // Predicated region
    $region38: #{tpu_custom_call.1} parent=1 // pred_check
      _
    $region39: #{tpu_custom_call.1} parent=1 // pred_check_branch
      %77 = sbr.rel (0) target = $region41
    $region40: #{tpu_custom_call.1} parent=1 // pred_region
      %78 = dma.done [#allocation4], 256
    $region41: #{tpu_custom_call.1} parent=1 // pred_fallthru
      _
    // Predicated region
    $region42: #{tpu_custom_call.1} parent=1 // pred_check
      _
    $region43: #{tpu_custom_call.1} parent=1 // pred_check_branch
      %80 = sbr.rel (0) target = $region45
    $region44: #{tpu_custom_call.1} parent=1 // pred_region
      %81 = dma.done [#allocation7], 256
    $region45: #{tpu_custom_call.1} parent=1 // pred_fallthru
      _
    // Predicated region
    $region46: #{tpu_custom_call.1} parent=1 // pred_check
      _
    $region47: #{tpu_custom_call.1} parent=1 // pred_check_branch
      %83 = sbr.rel (0) target = $region49
    $region48: #{tpu_custom_call.1} parent=1 // pred_region
      %84 = dma.done [#allocation7], 512
    $region49: #{tpu_custom_call.1} parent=1 // pred_fallthru
      _
    // Predicated region
    $region50: #{tpu_custom_call.1} parent=1 // pred_check
      _
    $region51: #{tpu_custom_call.1} parent=1 // pred_check_branch
      %86 = sbr.rel (0) target = $region53
    $region52: #{tpu_custom_call.1} parent=1 // pred_region
      %87 = dma.done [#allocation10], 512
    $region53: #{tpu_custom_call.1} parent=1 // pred_fallthru
      _
    %v88 = vld [vmem:[#allocation3] sm:$0xff]
    %v89 = vld [vmem:[#allocation3 + $0x8] sm:$0xff]
    %v90 = vld [vmem:[#allocation6] sm:$0xff]
    %v91 = vld [vmem:[#allocation6 + $0x8] sm:$0xff]
    %v92 = vld [vmem:[%s3] sm:$0x1]
    %v94 = vlaneseq
    %v95 = vshrl.u32 %v94, 7
    %v96 = vsub.s32 0, %v95
    %v97 = vrot.slane %v92, %v96
    %vm99 = vcmask 130048
    %v101 = vsel %vm99, %v88, 0
    %v104 = vsel %vm99, %v89, 0
    %106 = vmatprep.subr.mxu0 0.0
    %107 = vmatpush1.msra.mxu0 %v90
    %108 = vmatprep.subr.mxu0 0.0
    %109 = vmatpush1.msra.mxu0 %v91
    %110 = vmatprep.subr.mxu0 0.0
    %111 = vmatpush1.msra.mxu0 0.0
    %112 = vmatprep.subr.mxu0 0.0
    %113 = vmatpush1.msra.mxu0 0.0
    %114 = vmatprep.subr.mxu0 0.0
    %115 = vmatpush1.msra.mxu0 0.0
    %116 = vmatprep.subr.mxu0 0.0
    %117 = vmatpush1.msra.mxu0 0.0
    %118 = vmatprep.subr.mxu0 0.0
    %119 = vmatpush1.msra.mxu0 0.0
    %120 = vmatprep.subr.mxu0 0.0
    %121 = vmatpush1.msra.mxu0 0.0
    %122 = vmatprep.subr.mxu0 0.0
    %123 = vmatpush1.msra.mxu0 0.0
    %124 = vmatprep.subr.mxu0 0.0
    %125 = vmatpush1.msra.mxu0 0.0
    %126 = vmatprep.subr.mxu0 0.0
    %127 = vmatpush1.msra.mxu0 0.0
    %128 = vmatprep.subr.mxu0 0.0
    %129 = vmatpush1.msra.mxu0 0.0
    %130 = vmatprep.subr.mxu0 0.0
    %131 = vmatpush1.msra.mxu0 0.0
    %132 = vmatprep.subr.mxu0 0.0
    %133 = vmatpush1.msra.mxu0 0.0
    %134 = vmatprep.subr.mxu0 0.0
    %135 = vmatpush1.msra.mxu0 0.0
    %136 = vmatprep.subr.mxu0 0.0
    %137 = vmatpush1.msra.mxu0 0.0
    %138 = vmatprep.subr.mxu0 0.0
    %139 = vmatpush1.msra.mxu0 0.0
    %140 = vmatprep.subr.mxu0 0.0
    %141 = vmatpush1.msra.mxu0 0.0
    %142 = vmatprep.subr.mxu0 0.0
    %143 = vmatpush1.msra.mxu0 0.0
    %144 = vmatprep.subr.mxu0 0.0
    %145 = vmatpush1.msra.mxu0 0.0
    %146 = vmatprep.subr.mxu0 0.0
    %147 = vmatpush1.msra.mxu0 0.0
    %148 = vmatprep.subr.mxu0 0.0
    %149 = vmatpush1.msra.mxu0 0.0
    %150 = vmatprep.subr.mxu0 0.0
    %151 = vmatpush1.msra.mxu0 0.0
    %152 = vmatprep.subr.mxu0 0.0
    %153 = vmatpush1.msra.mxu0 0.0
    %154 = vmatprep.subr.mxu0 0.0
    %155 = vmatpush1.msra.mxu0 0.0
    %156 = vmatprep.subr.mxu0 0.0
    %157 = vmatpush1.msra.mxu0 0.0
    %158 = vmatprep.subr.mxu0 0.0
    %159 = vmatpush1.msra.mxu0 0.0
    %160 = vmatprep.subr.mxu0 0.0
    %161 = vmatpush1.msra.mxu0 0.0
    %162 = vmatprep.subr.mxu0 0.0
    %163 = vmatpush1.msra.mxu0 0.0
    %164 = vmatprep.subr.mxu0 0.0
    %165 = vmatpush1.msra.mxu0 0.0
    %166 = vmatprep.subr.mxu0 0.0
    %167 = vmatpush1.msra.mxu0 0.0
    %168 = vmatprep.subr.mxu0 0.0
    %169 = vmatpush1.msra.mxu0 0.0
    %170 = vmatprep.mubr.f32.mxu0 0.0
    %171 = vmatmul.mubr.f32.gmra.mrb[0].mxu0 %v101
    %v172 = vpop.f32.mrb[0].mxu0
    %v173 = vadd.f32 %v97, %v172
    %v174 = vpop.f32.mrb[0].mxu0
    %175 = vmatprep.mubr.f32.mxu0 0.0
    %176 = vmatmul.mubr.f32.gmra.mrb[0].mxu0 %v104
    %v177 = vpop.f32.mrb[0].mxu0
    %v178 = vadd.f32 %v97, %v177
    %v179 = vpop.f32.mrb[0].mxu0
    %180 = vdwg.mxu0
    %v181 = vld [vmem:[%s2] sm:$0xff]
    %v182 = vld [vmem:[%s2 + $0x8] sm:$0xff]
    %v183 = vld [vmem:[%s2 + $0x10] sm:$0xff]
    %v184 = vld [vmem:[%s2 + $0x18] sm:$0xff]
    %vm185 = vcmask 261120
    %v187 = vsel %vm185, 0.0, 0
    %189 = vmatprep.subr.mxu0 0.0
    %190 = vmatpush1.msra.mxu0 %v181
    %191 = vmatprep.subr.mxu0 0.0
    %192 = vmatpush1.msra.mxu0 %v182
    %193 = vmatprep.subr.mxu0 0.0
    %194 = vmatpush1.msra.mxu0 %v183
    %195 = vmatprep.subr.mxu0 0.0
    %196 = vmatpush1.msra.mxu0 %v184
    %197 = vmatprep.subr.mxu0 0.0
    %198 = vmatpush1.msra.mxu0 0.0
    %199 = vmatprep.subr.mxu0 0.0
    %200 = vmatpush1.msra.mxu0 0.0
    %201 = vmatprep.subr.mxu0 0.0
    %202 = vmatpush1.msra.mxu0 0.0
    %203 = vmatprep.subr.mxu0 0.0
    %204 = vmatpush1.msra.mxu0 0.0
    %205 = vmatprep.subr.mxu0 0.0
    %206 = vmatpush1.msra.mxu0 0.0
    %207 = vmatprep.subr.mxu0 0.0
    %208 = vmatpush1.msra.mxu0 0.0
    %209 = vmatprep.subr.mxu0 0.0
    %210 = vmatpush1.msra.mxu0 0.0
    %211 = vmatprep.subr.mxu0 0.0
    %212 = vmatpush1.msra.mxu0 0.0
    %213 = vmatprep.subr.mxu0 0.0
    %214 = vmatpush1.msra.mxu0 0.0
    %215 = vmatprep.subr.mxu0 0.0
    %216 = vmatpush1.msra.mxu0 0.0
    %217 = vmatprep.subr.mxu0 0.0
    %218 = vmatpush1.msra.mxu0 0.0
    %219 = vmatprep.subr.mxu0 0.0
    %220 = vmatpush1.msra.mxu0 0.0
    %221 = vmatprep.subr.mxu0 0.0
    %222 = vmatpush1.msra.mxu0 0.0
    %223 = vmatprep.subr.mxu0 0.0
    %224 = vmatpush1.msra.mxu0 0.0
    %225 = vmatprep.subr.mxu0 0.0
    %226 = vmatpush1.msra.mxu0 0.0
    %227 = vmatprep.subr.mxu0 0.0
    %228 = vmatpush1.msra.mxu0 0.0
    %229 = vmatprep.subr.mxu0 0.0
    %230 = vmatpush1.msra.mxu0 0.0
    %231 = vmatprep.subr.mxu0 0.0
    %232 = vmatpush1.msra.mxu0 0.0
    %233 = vmatprep.subr.mxu0 0.0
    %234 = vmatpush1.msra.mxu0 0.0
    %235 = vmatprep.subr.mxu0 0.0
    %236 = vmatpush1.msra.mxu0 0.0
    %237 = vmatprep.subr.mxu0 0.0
    %238 = vmatpush1.msra.mxu0 0.0
    %239 = vmatprep.subr.mxu0 0.0
    %240 = vmatpush1.msra.mxu0 0.0
    %241 = vmatprep.subr.mxu0 0.0
    %242 = vmatpush1.msra.mxu0 0.0
    %243 = vmatprep.subr.mxu0 0.0
    %244 = vmatpush1.msra.mxu0 0.0
    %245 = vmatprep.subr.mxu0 0.0
    %246 = vmatpush1.msra.mxu0 0.0
    %247 = vmatprep.subr.mxu0 0.0
    %248 = vmatpush1.msra.mxu0 0.0
    %249 = vmatprep.subr.mxu0 0.0
    %250 = vmatpush1.msra.mxu0 0.0
    %251 = vmatprep.subr.mxu0 0.0
    %252 = vmatpush1.msra.mxu0 0.0
    %253 = vmatprep.mubr.f32.mxu0 0.0
    %254 = vmatmul.mubr.f32.gmra.mrb[0].mxu0 %v187
    %v255 = vpop.f32.mrb[0].mxu0
    %v256 = vadd.f32 0.0, %v255
    %v257 = vpop.f32.mrb[0].mxu0
    %258 = vdwg.mxu0
    %v259 = vadd.f32 %v173, %v256
    %v260 = vxor.u32 %v259, 2147483648
    %v261 = vmul.f32 %v260, 1.442695
    %v262 = vpow.pop %v261
    %v263 = vadd.f32 %v262, 1.0
    %v264 = vrcp.pop %v263
    %v265 = vmul.f32 1.0, %v264
    %v266 = vtanh.pop %v259
    %v267 = vmul.f32 %v265, 0.0
    %269 = vrot.lane.b32.xlu0 %v266, 64
    %v270 = vpop.permute.xlu0 %269
    %v272 = vmul.f32 %v265, %v270
    %274 = vrot.lane.b32.xlu0 %v272, 32
    %v275 = vpop.permute.xlu0 %274
    %v277 = vadd.f32 %v267, %v275
    %v278 = vtanh.pop %v277
    %280 = vrot.lane.b32.xlu0 %v278, 64
    %v281 = vpop.permute.xlu0 %280
    %v283 = vmul.f32 %v265, %v281
    %285 = vrot.lane.b32.xlu0 %v283, 32
    %v286 = vpop.permute.xlu0 %285
    %vm288 = vcmask 254976
    %289 = vst.msk [vmem:[#allocation2] sm:$0x3] %vm288, %v286
    %v290 = vsel %vm185, %v286, 0
    %292 = vmatprep.subr.mxu0 0.0
    %293 = vmatpush1.msra.mxu0 %v181
    %294 = vmatprep.subr.mxu0 0.0
    %295 = vmatpush1.msra.mxu0 %v182
    %296 = vmatprep.subr.mxu0 0.0
    %297 = vmatpush1.msra.mxu0 %v183
    %298 = vmatprep.subr.mxu0 0.0
    %299 = vmatpush1.msra.mxu0 %v184
    %300 = vmatprep.subr.mxu0 0.0
    %301 = vmatpush1.msra.mxu0 0.0
    %302 = vmatprep.subr.mxu0 0.0
    %303 = vmatpush1.msra.mxu0 0.0
    %304 = vmatprep.subr.mxu0 0.0
    %305 = vmatpush1.msra.mxu0 0.0
    %306 = vmatprep.subr.mxu0 0.0
    %307 = vmatpush1.msra.mxu0 0.0
    %308 = vmatprep.subr.mxu0 0.0
    %309 = vmatpush1.msra.mxu0 0.0
    %310 = vmatprep.subr.mxu0 0.0
    %311 = vmatpush1.msra.mxu0 0.0
    %312 = vmatprep.subr.mxu0 0.0
    %313 = vmatpush1.msra.mxu0 0.0
    %314 = vmatprep.subr.mxu0 0.0
    %315 = vmatpush1.msra.mxu0 0.0
    %316 = vmatprep.subr.mxu0 0.0
    %317 = vmatpush1.msra.mxu0 0.0
    %318 = vmatprep.subr.mxu0 0.0
    %319 = vmatpush1.msra.mxu0 0.0
    %320 = vmatprep.subr.mxu0 0.0
    %321 = vmatpush1.msra.mxu0 0.0
    %322 = vmatprep.subr.mxu0 0.0
    %323 = vmatpush1.msra.mxu0 0.0
    %324 = vmatprep.subr.mxu0 0.0
    %325 = vmatpush1.msra.mxu0 0.0
    %326 = vmatprep.subr.mxu0 0.0
    %327 = vmatpush1.msra.mxu0 0.0
    %328 = vmatprep.subr.mxu0 0.0
    %329 = vmatpush1.msra.mxu0 0.0
    %330 = vmatprep.subr.mxu0 0.0
    %331 = vmatpush1.msra.mxu0 0.0
    %332 = vmatprep.subr.mxu0 0.0
    %333 = vmatpush1.msra.mxu0 0.0
    %334 = vmatprep.subr.mxu0 0.0
    %335 = vmatpush1.msra.mxu0 0.0
    %336 = vmatprep.subr.mxu0 0.0
    %337 = vmatpush1.msra.mxu0 0.0
    %338 = vmatprep.subr.mxu0 0.0
    %339 = vmatpush1.msra.mxu0 0.0
    %340 = vmatprep.subr.mxu0 0.0
    %341 = vmatpush1.msra.mxu0 0.0
    %342 = vmatprep.subr.mxu0 0.0
    %343 = vmatpush1.msra.mxu0 0.0
    %344 = vmatprep.subr.mxu0 0.0
    %345 = vmatpush1.msra.mxu0 0.0
    %346 = vmatprep.subr.mxu0 0.0
    %347 = vmatpush1.msra.mxu0 0.0
    %348 = vmatprep.subr.mxu0 0.0
    %349 = vmatpush1.msra.mxu0 0.0
    %350 = vmatprep.subr.mxu0 0.0
    %351 = vmatpush1.msra.mxu0 0.0
    %352 = vmatprep.subr.mxu0 0.0
    %353 = vmatpush1.msra.mxu0 0.0
    %354 = vmatprep.subr.mxu0 0.0
    %355 = vmatpush1.msra.mxu0 0.0
    %356 = vmatprep.mubr.f32.mxu0 0.0
    %357 = vmatmul.mubr.f32.gmra.mrb[0].mxu0 %v290
    %v358 = vpop.f32.mrb[0].mxu0
    %v359 = vadd.f32 0.0, %v358
    %v360 = vpop.f32.mrb[0].mxu0
    %361 = vdwg.mxu0
    %v363 = vrot.slane %v359, 6
    %v365 = vadd.f32 %v173, %v363
    %v366 = vxor.u32 %v365, 2147483648
    %v367 = vmul.f32 %v366, 1.442695
    %v368 = vpow.pop %v367
    %v369 = vadd.f32 %v368, 1.0
    %v370 = vrcp.pop %v369
    %v371 = vmul.f32 1.0, %v370
    %v372 = vtanh.pop %v365
    %v374 = vrot.slane %v277, 6
    %v376 = vmul.f32 %v371, %v374
    %378 = vrot.lane.b32.xlu0 %v372, 64
    %v379 = vpop.permute.xlu0 %378
    %v381 = vmul.f32 %v371, %v379
    %383 = vrot.lane.b32.xlu0 %v381, 32
    %v384 = vpop.permute.xlu0 %383
    %v386 = vadd.f32 %v376, %v384
    %v387 = vtanh.pop %v386
    %389 = vrot.lane.b32.xlu0 %v387, 64
    %v390 = vpop.permute.xlu0 %389
    %v392 = vmul.f32 %v371, %v390
    %394 = vrot.lane.b32.xlu0 %v392, 32
    %v395 = vpop.permute.xlu0 %394
    %vm397 = vcmask 257026
    %398 = vst.msk [vmem:[#allocation2] sm:$0xc] %vm397, %v395
    %v399 = vrot.slane %v392, 2
    %400 = vrot.lane.b32.xlu0 %v399, 32
    %v401 = vpop.permute.xlu0 %400
    %v402 = vsel %vm185, %v401, 0
    %404 = vmatprep.subr.mxu0 0.0
    %405 = vmatpush1.msra.mxu0 %v181
    %406 = vmatprep.subr.mxu0 0.0
    %407 = vmatpush1.msra.mxu0 %v182
    %408 = vmatprep.subr.mxu0 0.0
    %409 = vmatpush1.msra.mxu0 %v183
    %410 = vmatprep.subr.mxu0 0.0
    %411 = vmatpush1.msra.mxu0 %v184
    %412 = vmatprep.subr.mxu0 0.0
    %413 = vmatpush1.msra.mxu0 0.0
    %414 = vmatprep.subr.mxu0 0.0
    %415 = vmatpush1.msra.mxu0 0.0
    %416 = vmatprep.subr.mxu0 0.0
    %417 = vmatpush1.msra.mxu0 0.0
    %418 = vmatprep.subr.mxu0 0.0
    %419 = vmatpush1.msra.mxu0 0.0
    %420 = vmatprep.subr.mxu0 0.0
    %421 = vmatpush1.msra.mxu0 0.0
    %422 = vmatprep.subr.mxu0 0.0
    %423 = vmatpush1.msra.mxu0 0.0
    %424 = vmatprep.subr.mxu0 0.0
    %425 = vmatpush1.msra.mxu0 0.0
    %426 = vmatprep.subr.mxu0 0.0
    %427 = vmatpush1.msra.mxu0 0.0
    %428 = vmatprep.subr.mxu0 0.0
    %429 = vmatpush1.msra.mxu0 0.0
    %430 = vmatprep.subr.mxu0 0.0
    %431 = vmatpush1.msra.mxu0 0.0
    %432 = vmatprep.subr.mxu0 0.0
    %433 = vmatpush1.msra.mxu0 0.0
    %434 = vmatprep.subr.mxu0 0.0
    %435 = vmatpush1.msra.mxu0 0.0
    %436 = vmatprep.subr.mxu0 0.0
    %437 = vmatpush1.msra.mxu0 0.0
    %438 = vmatprep.subr.mxu0 0.0
    %439 = vmatpush1.msra.mxu0 0.0
    %440 = vmatprep.subr.mxu0 0.0
    %441 = vmatpush1.msra.mxu0 0.0
    %442 = vmatprep.subr.mxu0 0.0
    %443 = vmatpush1.msra.mxu0 0.0
    %444 = vmatprep.subr.mxu0 0.0
    %445 = vmatpush1.msra.mxu0 0.0
    %446 = vmatprep.subr.mxu0 0.0
    %447 = vmatpush1.msra.mxu0 0.0
    %448 = vmatprep.subr.mxu0 0.0
    %449 = vmatpush1.msra.mxu0 0.0
    %450 = vmatprep.subr.mxu0 0.0
    %451 = vmatpush1.msra.mxu0 0.0
    %452 = vmatprep.subr.mxu0 0.0
    %453 = vmatpush1.msra.mxu0 0.0
    %454 = vmatprep.subr.mxu0 0.0
    %455 = vmatpush1.msra.mxu0 0.0
    %456 = vmatprep.subr.mxu0 0.0
    %457 = vmatpush1.msra.mxu0 0.0
    %458 = vmatprep.subr.mxu0 0.0
    %459 = vmatpush1.msra.mxu0 0.0
    %460 = vmatprep.subr.mxu0 0.0
    %461 = vmatpush1.msra.mxu0 0.0
    %462 = vmatprep.subr.mxu0 0.0
    %463 = vmatpush1.msra.mxu0 0.0
    %464 = vmatprep.subr.mxu0 0.0
    %465 = vmatpush1.msra.mxu0 0.0
    %466 = vmatprep.subr.mxu0 0.0
    %467 = vmatpush1.msra.mxu0 0.0
    %468 = vmatprep.mubr.f32.mxu0 0.0
    %469 = vmatmul.mubr.f32.gmra.mrb[0].mxu0 %v402
    %v470 = vpop.f32.mrb[0].mxu0
    %v471 = vadd.f32 0.0, %v470
    %v472 = vpop.f32.mrb[0].mxu0
    %473 = vdwg.mxu0
    %v475 = vrot.slane %v471, 4
    %v477 = vadd.f32 %v173, %v475
    %v478 = vxor.u32 %v477, 2147483648
    %v479 = vmul.f32 %v478, 1.442695
    %v480 = vpow.pop %v479
    %v481 = vadd.f32 %v480, 1.0
    %v482 = vrcp.pop %v481
    %v483 = vmul.f32 1.0, %v482
    %v484 = vtanh.pop %v477
    %v486 = vrot.slane %v386, 6
    %v488 = vmul.f32 %v483, %v486
    %490 = vrot.lane.b32.xlu0 %v484, 64
    %v491 = vpop.permute.xlu0 %490
    %v493 = vmul.f32 %v483, %v491
    %495 = vrot.lane.b32.xlu0 %v493, 32
    %v496 = vpop.permute.xlu0 %495
    %v498 = vadd.f32 %v488, %v496
    %v499 = vtanh.pop %v498
    %501 = vrot.lane.b32.xlu0 %v499, 64
    %v502 = vpop.permute.xlu0 %501
    %v504 = vmul.f32 %v483, %v502
    %506 = vrot.lane.b32.xlu0 %v504, 32
    %v507 = vpop.permute.xlu0 %506
    %vm509 = vcmask 259076
    %510 = vst.msk [vmem:[#allocation2] sm:$0x30] %vm509, %v507
    %v511 = vrot.slane %v504, 4
    %512 = vrot.lane.b32.xlu0 %v511, 32
    %v513 = vpop.permute.xlu0 %512
    %v514 = vsel %vm185, %v513, 0
    %516 = vmatprep.subr.mxu0 0.0
    %517 = vmatpush1.msra.mxu0 %v181
    %518 = vmatprep.subr.mxu0 0.0
    %519 = vmatpush1.msra.mxu0 %v182
    %520 = vmatprep.subr.mxu0 0.0
    %521 = vmatpush1.msra.mxu0 %v183
    %522 = vmatprep.subr.mxu0 0.0
    %523 = vmatpush1.msra.mxu0 %v184
    %524 = vmatprep.subr.mxu0 0.0
    %525 = vmatpush1.msra.mxu0 0.0
    %526 = vmatprep.subr.mxu0 0.0
    %527 = vmatpush1.msra.mxu0 0.0
    %528 = vmatprep.subr.mxu0 0.0
    %529 = vmatpush1.msra.mxu0 0.0
    %530 = vmatprep.subr.mxu0 0.0
    %531 = vmatpush1.msra.mxu0 0.0
    %532 = vmatprep.subr.mxu0 0.0
    %533 = vmatpush1.msra.mxu0 0.0
    %534 = vmatprep.subr.mxu0 0.0
    %535 = vmatpush1.msra.mxu0 0.0
    %536 = vmatprep.subr.mxu0 0.0
    %537 = vmatpush1.msra.mxu0 0.0
    %538 = vmatprep.subr.mxu0 0.0
    %539 = vmatpush1.msra.mxu0 0.0
    %540 = vmatprep.subr.mxu0 0.0
    %541 = vmatpush1.msra.mxu0 0.0
    %542 = vmatprep.subr.mxu0 0.0
    %543 = vmatpush1.msra.mxu0 0.0
    %544 = vmatprep.subr.mxu0 0.0
    %545 = vmatpush1.msra.mxu0 0.0
    %546 = vmatprep.subr.mxu0 0.0
    %547 = vmatpush1.msra.mxu0 0.0
    %548 = vmatprep.subr.mxu0 0.0
    %549 = vmatpush1.msra.mxu0 0.0
    %550 = vmatprep.subr.mxu0 0.0
    %551 = vmatpush1.msra.mxu0 0.0
    %552 = vmatprep.subr.mxu0 0.0
    %553 = vmatpush1.msra.mxu0 0.0
    %554 = vmatprep.subr.mxu0 0.0
    %555 = vmatpush1.msra.mxu0 0.0
    %556 = vmatprep.subr.mxu0 0.0
    %557 = vmatpush1.msra.mxu0 0.0
    %558 = vmatprep.subr.mxu0 0.0
    %559 = vmatpush1.msra.mxu0 0.0
    %560 = vmatprep.subr.mxu0 0.0
    %561 = vmatpush1.msra.mxu0 0.0
    %562 = vmatprep.subr.mxu0 0.0
    %563 = vmatpush1.msra.mxu0 0.0
    %564 = vmatprep.subr.mxu0 0.0
    %565 = vmatpush1.msra.mxu0 0.0
    %566 = vmatprep.subr.mxu0 0.0
    %567 = vmatpush1.msra.mxu0 0.0
    %568 = vmatprep.subr.mxu0 0.0
    %569 = vmatpush1.msra.mxu0 0.0
    %570 = vmatprep.subr.mxu0 0.0
    %571 = vmatpush1.msra.mxu0 0.0
    %572 = vmatprep.subr.mxu0 0.0
    %573 = vmatpush1.msra.mxu0 0.0
    %574 = vmatprep.subr.mxu0 0.0
    %575 = vmatpush1.msra.mxu0 0.0
    %576 = vmatprep.subr.mxu0 0.0
    %577 = vmatpush1.msra.mxu0 0.0
    %578 = vmatprep.subr.mxu0 0.0
    %579 = vmatpush1.msra.mxu0 0.0
    %580 = vmatprep.mubr.f32.mxu0 0.0
    %581 = vmatmul.mubr.f32.gmra.mrb[0].mxu0 %v514
    %v582 = vpop.f32.mrb[0].mxu0
    %v583 = vadd.f32 0.0, %v582
    %v584 = vpop.f32.mrb[0].mxu0
    %585 = vdwg.mxu0
    %v587 = vrot.slane %v583, 2
    %v589 = vadd.f32 %v173, %v587
    %v590 = vxor.u32 %v589, 2147483648
    %v591 = vmul.f32 %v590, 1.442695
    %v592 = vpow.pop %v591
    %v593 = vadd.f32 %v592, 1.0
    %v594 = vrcp.pop %v593
    %v595 = vmul.f32 1.0, %v594
    %v596 = vtanh.pop %v589
    %v598 = vrot.slane %v498, 6
    %v600 = vmul.f32 %v595, %v598
    %602 = vrot.lane.b32.xlu0 %v596, 64
    %v603 = vpop.permute.xlu0 %602
    %v605 = vmul.f32 %v595, %v603
    %607 = vrot.lane.b32.xlu0 %v605, 32
    %v608 = vpop.permute.xlu0 %607
    %v610 = vadd.f32 %v600, %v608
    %v611 = vtanh.pop %v610
    %613 = vrot.lane.b32.xlu0 %v611, 64
    %v614 = vpop.permute.xlu0 %613
    %v616 = vmul.f32 %v595, %v614
    %618 = vrot.lane.b32.xlu0 %v616, 32
    %v619 = vpop.permute.xlu0 %618
    %vm621 = vcmask 261126
    %622 = vst.msk [vmem:[#allocation2] sm:$0xc0] %vm621, %v619
    %v623 = vrot.slane %v616, 6
    %624 = vrot.lane.b32.xlu0 %v623, 32
    %v625 = vpop.permute.xlu0 %624
    %v626 = vsel %vm185, %v625, 0
    %628 = vmatprep.subr.mxu0 0.0
    %629 = vmatpush1.msra.mxu0 %v181
    %630 = vmatprep.subr.mxu0 0.0
    %631 = vmatpush1.msra.mxu0 %v182
    %632 = vmatprep.subr.mxu0 0.0
    %633 = vmatpush1.msra.mxu0 %v183
    %634 = vmatprep.subr.mxu0 0.0
    %635 = vmatpush1.msra.mxu0 %v184
    %636 = vmatprep.subr.mxu0 0.0
    %637 = vmatpush1.msra.mxu0 0.0
    %638 = vmatprep.subr.mxu0 0.0
    %639 = vmatpush1.msra.mxu0 0.0
    %640 = vmatprep.subr.mxu0 0.0
    %641 = vmatpush1.msra.mxu0 0.0
    %642 = vmatprep.subr.mxu0 0.0
    %643 = vmatpush1.msra.mxu0 0.0
    %644 = vmatprep.subr.mxu0 0.0
    %645 = vmatpush1.msra.mxu0 0.0
    %646 = vmatprep.subr.mxu0 0.0
    %647 = vmatpush1.msra.mxu0 0.0
    %648 = vmatprep.subr.mxu0 0.0
    %649 = vmatpush1.msra.mxu0 0.0
    %650 = vmatprep.subr.mxu0 0.0
    %651 = vmatpush1.msra.mxu0 0.0
    %652 = vmatprep.subr.mxu0 0.0
    %653 = vmatpush1.msra.mxu0 0.0
    %654 = vmatprep.subr.mxu0 0.0
    %655 = vmatpush1.msra.mxu0 0.0
    %656 = vmatprep.subr.mxu0 0.0
    %657 = vmatpush1.msra.mxu0 0.0
    %658 = vmatprep.subr.mxu0 0.0
    %659 = vmatpush1.msra.mxu0 0.0
    %660 = vmatprep.subr.mxu0 0.0
    %661 = vmatpush1.msra.mxu0 0.0
    %662 = vmatprep.subr.mxu0 0.0
    %663 = vmatpush1.msra.mxu0 0.0
    %664 = vmatprep.subr.mxu0 0.0
    %665 = vmatpush1.msra.mxu0 0.0
    %666 = vmatprep.subr.mxu0 0.0
    %667 = vmatpush1.msra.mxu0 0.0
    %668 = vmatprep.subr.mxu0 0.0
    %669 = vmatpush1.msra.mxu0 0.0
    %670 = vmatprep.subr.mxu0 0.0
    %671 = vmatpush1.msra.mxu0 0.0
    %672 = vmatprep.subr.mxu0 0.0
    %673 = vmatpush1.msra.mxu0 0.0
    %674 = vmatprep.subr.mxu0 0.0
    %675 = vmatpush1.msra.mxu0 0.0
    %676 = vmatprep.subr.mxu0 0.0
    %677 = vmatpush1.msra.mxu0 0.0
    %678 = vmatprep.subr.mxu0 0.0
    %679 = vmatpush1.msra.mxu0 0.0
    %680 = vmatprep.subr.mxu0 0.0
    %681 = vmatpush1.msra.mxu0 0.0
    %682 = vmatprep.subr.mxu0 0.0
    %683 = vmatpush1.msra.mxu0 0.0
    %684 = vmatprep.subr.mxu0 0.0
    %685 = vmatpush1.msra.mxu0 0.0
    %686 = vmatprep.subr.mxu0 0.0
    %687 = vmatpush1.msra.mxu0 0.0
    %688 = vmatprep.subr.mxu0 0.0
    %689 = vmatpush1.msra.mxu0 0.0
    %690 = vmatprep.subr.mxu0 0.0
    %691 = vmatpush1.msra.mxu0 0.0
    %692 = vmatprep.mubr.f32.mxu0 0.0
    %693 = vmatmul.mubr.f32.gmra.mrb[0].mxu0 %v626
    %v694 = vpop.f32.mrb[0].mxu0
    %v695 = vadd.f32 0.0, %v694
    %v696 = vpop.f32.mrb[0].mxu0
    %697 = vdwg.mxu0
    %v698 = vadd.f32 %v178, %v695
    %v699 = vxor.u32 %v698, 2147483648
    %v700 = vmul.f32 %v699, 1.442695
    %v701 = vpow.pop %v700
    %v702 = vadd.f32 %v701, 1.0
    %v703 = vrcp.pop %v702
    %v704 = vmul.f32 1.0, %v703
    %v705 = vtanh.pop %v698
    %v707 = vrot.slane %v610, 6
    %v709 = vmul.f32 %v704, %v707
    %711 = vrot.lane.b32.xlu0 %v705, 64
    %v712 = vpop.permute.xlu0 %711
    %v714 = vmul.f32 %v704, %v712
    %716 = vrot.lane.b32.xlu0 %v714, 32
    %v717 = vpop.permute.xlu0 %716
    %v719 = vadd.f32 %v709, %v717
    %v720 = vtanh.pop %v719
    %722 = vrot.lane.b32.xlu0 %v720, 64
    %v723 = vpop.permute.xlu0 %722
    %v725 = vmul.f32 %v704, %v723
    %727 = vrot.lane.b32.xlu0 %v725, 32
    %v728 = vpop.permute.xlu0 %727
    %730 = vst.msk [vmem:[#allocation2 + $0x8] sm:$0x3] %vm288, %v728
    %v731 = vsel %vm185, %v728, 0
    %733 = vmatprep.subr.mxu0 0.0
    %734 = vmatpush1.msra.mxu0 %v181
    %735 = vmatprep.subr.mxu0 0.0
    %736 = vmatpush1.msra.mxu0 %v182
    %737 = vmatprep.subr.mxu0 0.0
    %738 = vmatpush1.msra.mxu0 %v183
    %739 = vmatprep.subr.mxu0 0.0
    %740 = vmatpush1.msra.mxu0 %v184
    %741 = vmatprep.subr.mxu0 0.0
    %742 = vmatpush1.msra.mxu0 0.0
    %743 = vmatprep.subr.mxu0 0.0
    %744 = vmatpush1.msra.mxu0 0.0
    %745 = vmatprep.subr.mxu0 0.0
    %746 = vmatpush1.msra.mxu0 0.0
    %747 = vmatprep.subr.mxu0 0.0
    %748 = vmatpush1.msra.mxu0 0.0
    %749 = vmatprep.subr.mxu0 0.0
    %750 = vmatpush1.msra.mxu0 0.0
    %751 = vmatprep.subr.mxu0 0.0
    %752 = vmatpush1.msra.mxu0 0.0
    %753 = vmatprep.subr.mxu0 0.0
    %754 = vmatpush1.msra.mxu0 0.0
    %755 = vmatprep.subr.mxu0 0.0
    %756 = vmatpush1.msra.mxu0 0.0
    %757 = vmatprep.subr.mxu0 0.0
    %758 = vmatpush1.msra.mxu0 0.0
    %759 = vmatprep.subr.mxu0 0.0
    %760 = vmatpush1.msra.mxu0 0.0
    %761 = vmatprep.subr.mxu0 0.0
    %762 = vmatpush1.msra.mxu0 0.0
    %763 = vmatprep.subr.mxu0 0.0
    %764 = vmatpush1.msra.mxu0 0.0
    %765 = vmatprep.subr.mxu0 0.0
    %766 = vmatpush1.msra.mxu0 0.0
    %767 = vmatprep.subr.mxu0 0.0
    %768 = vmatpush1.msra.mxu0 0.0
    %769 = vmatprep.subr.mxu0 0.0
    %770 = vmatpush1.msra.mxu0 0.0
    %771 = vmatprep.subr.mxu0 0.0
    %772 = vmatpush1.msra.mxu0 0.0
    %773 = vmatprep.subr.mxu0 0.0
    %774 = vmatpush1.msra.mxu0 0.0
    %775 = vmatprep.subr.mxu0 0.0
    %776 = vmatpush1.msra.mxu0 0.0
    %777 = vmatprep.subr.mxu0 0.0
    %778 = vmatpush1.msra.mxu0 0.0
    %779 = vmatprep.subr.mxu0 0.0
    %780 = vmatpush1.msra.mxu0 0.0
    %781 = vmatprep.subr.mxu0 0.0
    %782 = vmatpush1.msra.mxu0 0.0
    %783 = vmatprep.subr.mxu0 0.0
    %784 = vmatpush1.msra.mxu0 0.0
    %785 = vmatprep.subr.mxu0 0.0
    %786 = vmatpush1.msra.mxu0 0.0
    %787 = vmatprep.subr.mxu0 0.0
    %788 = vmatpush1.msra.mxu0 0.0
    %789 = vmatprep.subr.mxu0 0.0
    %790 = vmatpush1.msra.mxu0 0.0
    %791 = vmatprep.subr.mxu0 0.0
    %792 = vmatpush1.msra.mxu0 0.0
    %793 = vmatprep.subr.mxu0 0.0
    %794 = vmatpush1.msra.mxu0 0.0
    %795 = vmatprep.subr.mxu0 0.0
    %796 = vmatpush1.msra.mxu0 0.0
    %797 = vmatprep.mubr.f32.mxu0 0.0
    %798 = vmatmul.mubr.f32.gmra.mrb[0].mxu0 %v731
    %v799 = vpop.f32.mrb[0].mxu0
    %v800 = vadd.f32 0.0, %v799
    %v801 = vpop.f32.mrb[0].mxu0
    %802 = vdwg.mxu0
    %v804 = vrot.slane %v800, 6
    %v806 = vadd.f32 %v178, %v804
    %v807 = vxor.u32 %v806, 2147483648
    %v808 = vmul.f32 %v807, 1.442695
    %v809 = vpow.pop %v808
    %v810 = vadd.f32 %v809, 1.0
    %v811 = vrcp.pop %v810
    %v812 = vmul.f32 1.0, %v811
    %v813 = vtanh.pop %v806
    %v815 = vrot.slane %v719, 6
    %v817 = vmul.f32 %v812, %v815
    %819 = vrot.lane.b32.xlu0 %v813, 64
    %v820 = vpop.permute.xlu0 %819
    %v822 = vmul.f32 %v812, %v820
    %824 = vrot.lane.b32.xlu0 %v822, 32
    %v825 = vpop.permute.xlu0 %824
    %v827 = vadd.f32 %v817, %v825
    %v828 = vtanh.pop %v827
    %830 = vrot.lane.b32.xlu0 %v828, 64
    %v831 = vpop.permute.xlu0 %830
    %v833 = vmul.f32 %v812, %v831
    %835 = vrot.lane.b32.xlu0 %v833, 32
    %v836 = vpop.permute.xlu0 %835
    %838 = vst.msk [vmem:[#allocation2 + $0x8] sm:$0xc] %vm397, %v836
    %v839 = vrot.slane %v833, 2
    %840 = vrot.lane.b32.xlu0 %v839, 32
    %v841 = vpop.permute.xlu0 %840
    %v842 = vsel %vm185, %v841, 0
    %844 = vmatprep.subr.mxu0 0.0
    %845 = vmatpush1.msra.mxu0 %v181
    %846 = vmatprep.subr.mxu0 0.0
    %847 = vmatpush1.msra.mxu0 %v182
    %848 = vmatprep.subr.mxu0 0.0
    %849 = vmatpush1.msra.mxu0 %v183
    %850 = vmatprep.subr.mxu0 0.0
    %851 = vmatpush1.msra.mxu0 %v184
    %852 = vmatprep.subr.mxu0 0.0
    %853 = vmatpush1.msra.mxu0 0.0
    %854 = vmatprep.subr.mxu0 0.0
    %855 = vmatpush1.msra.mxu0 0.0
    %856 = vmatprep.subr.mxu0 0.0
    %857 = vmatpush1.msra.mxu0 0.0
    %858 = vmatprep.subr.mxu0 0.0
    %859 = vmatpush1.msra.mxu0 0.0
    %860 = vmatprep.subr.mxu0 0.0
    %861 = vmatpush1.msra.mxu0 0.0
    %862 = vmatprep.subr.mxu0 0.0
    %863 = vmatpush1.msra.mxu0 0.0
    %864 = vmatprep.subr.mxu0 0.0
    %865 = vmatpush1.msra.mxu0 0.0
    %866 = vmatprep.subr.mxu0 0.0
    %867 = vmatpush1.msra.mxu0 0.0
    %868 = vmatprep.subr.mxu0 0.0
    %869 = vmatpush1.msra.mxu0 0.0
    %870 = vmatprep.subr.mxu0 0.0
    %871 = vmatpush1.msra.mxu0 0.0
    %872 = vmatprep.subr.mxu0 0.0
    %873 = vmatpush1.msra.mxu0 0.0
    %874 = vmatprep.subr.mxu0 0.0
    %875 = vmatpush1.msra.mxu0 0.0
    %876 = vmatprep.subr.mxu0 0.0
    %877 = vmatpush1.msra.mxu0 0.0
    %878 = vmatprep.subr.mxu0 0.0
    %879 = vmatpush1.msra.mxu0 0.0
    %880 = vmatprep.subr.mxu0 0.0
    %881 = vmatpush1.msra.mxu0 0.0
    %882 = vmatprep.subr.mxu0 0.0
    %883 = vmatpush1.msra.mxu0 0.0
    %884 = vmatprep.subr.mxu0 0.0
    %885 = vmatpush1.msra.mxu0 0.0
    %886 = vmatprep.subr.mxu0 0.0
    %887 = vmatpush1.msra.mxu0 0.0
    %888 = vmatprep.subr.mxu0 0.0
    %889 = vmatpush1.msra.mxu0 0.0
    %890 = vmatprep.subr.mxu0 0.0
    %891 = vmatpush1.msra.mxu0 0.0
    %892 = vmatprep.subr.mxu0 0.0
    %893 = vmatpush1.msra.mxu0 0.0
    %894 = vmatprep.subr.mxu0 0.0
    %895 = vmatpush1.msra.mxu0 0.0
    %896 = vmatprep.subr.mxu0 0.0
    %897 = vmatpush1.msra.mxu0 0.0
    %898 = vmatprep.subr.mxu0 0.0
    %899 = vmatpush1.msra.mxu0 0.0
    %900 = vmatprep.subr.mxu0 0.0
    %901 = vmatpush1.msra.mxu0 0.0
    %902 = vmatprep.subr.mxu0 0.0
    %903 = vmatpush1.msra.mxu0 0.0
    %904 = vmatprep.subr.mxu0 0.0
    %905 = vmatpush1.msra.mxu0 0.0
    %906 = vmatprep.subr.mxu0 0.0
    %907 = vmatpush1.msra.mxu0 0.0
    %908 = vmatprep.mubr.f32.mxu0 0.0
    %909 = vmatmul.mubr.f32.gmra.mrb[0].mxu0 %v842
    %v910 = vpop.f32.mrb[0].mxu0
    %v911 = vadd.f32 0.0, %v910
    %v912 = vpop.f32.mrb[0].mxu0
    %913 = vdwg.mxu0
    %v915 = vrot.slane %v911, 4
    %v917 = vadd.f32 %v178, %v915
    %v918 = vxor.u32 %v917, 2147483648
    %v919 = vmul.f32 %v918, 1.442695
    %v920 = vpow.pop %v919
    %v921 = vadd.f32 %v920, 1.0
    %v922 = vrcp.pop %v921
    %v923 = vmul.f32 1.0, %v922
    %v924 = vtanh.pop %v917
    %v926 = vrot.slane %v827, 6
    %v928 = vmul.f32 %v923, %v926
    %930 = vrot.lane.b32.xlu0 %v924, 64
    %v931 = vpop.permute.xlu0 %930
    %v933 = vmul.f32 %v923, %v931
    %935 = vrot.lane.b32.xlu0 %v933, 32
    %v936 = vpop.permute.xlu0 %935
    %v938 = vadd.f32 %v928, %v936
    %v939 = vtanh.pop %v938
    %941 = vrot.lane.b32.xlu0 %v939, 64
    %v942 = vpop.permute.xlu0 %941
    %v944 = vmul.f32 %v923, %v942
    %946 = vrot.lane.b32.xlu0 %v944, 32
    %v947 = vpop.permute.xlu0 %946
    %949 = vst.msk [vmem:[#allocation2 + $0x8] sm:$0x30] %vm509, %v947
    %v950 = vrot.slane %v944, 4
    %951 = vrot.lane.b32.xlu0 %v950, 32
    %v952 = vpop.permute.xlu0 %951
    %v953 = vsel %vm185, %v952, 0
    %955 = vmatprep.subr.mxu0 0.0
    %956 = vmatpush1.msra.mxu0 %v181
    %957 = vmatprep.subr.mxu0 0.0
    %958 = vmatpush1.msra.mxu0 %v182
    %959 = vmatprep.subr.mxu0 0.0
    %960 = vmatpush1.msra.mxu0 %v183
    %961 = vmatprep.subr.mxu0 0.0
    %962 = vmatpush1.msra.mxu0 %v184
    %963 = vmatprep.subr.mxu0 0.0
    %964 = vmatpush1.msra.mxu0 0.0
    %965 = vmatprep.subr.mxu0 0.0
    %966 = vmatpush1.msra.mxu0 0.0
    %967 = vmatprep.subr.mxu0 0.0
    %968 = vmatpush1.msra.mxu0 0.0
    %969 = vmatprep.subr.mxu0 0.0
    %970 = vmatpush1.msra.mxu0 0.0
    %971 = vmatprep.subr.mxu0 0.0
    %972 = vmatpush1.msra.mxu0 0.0
    %973 = vmatprep.subr.mxu0 0.0
    %974 = vmatpush1.msra.mxu0 0.0
    %975 = vmatprep.subr.mxu0 0.0
    %976 = vmatpush1.msra.mxu0 0.0
    %977 = vmatprep.subr.mxu0 0.0
    %978 = vmatpush1.msra.mxu0 0.0
    %979 = vmatprep.subr.mxu0 0.0
    %980 = vmatpush1.msra.mxu0 0.0
    %981 = vmatprep.subr.mxu0 0.0
    %982 = vmatpush1.msra.mxu0 0.0
    %983 = vmatprep.subr.mxu0 0.0
    %984 = vmatpush1.msra.mxu0 0.0
    %985 = vmatprep.subr.mxu0 0.0
    %986 = vmatpush1.msra.mxu0 0.0
    %987 = vmatprep.subr.mxu0 0.0
    %988 = vmatpush1.msra.mxu0 0.0
    %989 = vmatprep.subr.mxu0 0.0
    %990 = vmatpush1.msra.mxu0 0.0
    %991 = vmatprep.subr.mxu0 0.0
    %992 = vmatpush1.msra.mxu0 0.0
    %993 = vmatprep.subr.mxu0 0.0
    %994 = vmatpush1.msra.mxu0 0.0
    %995 = vmatprep.subr.mxu0 0.0
    %996 = vmatpush1.msra.mxu0 0.0
    %997 = vmatprep.subr.mxu0 0.0
    %998 = vmatpush1.msra.mxu0 0.0
    %999 = vmatprep.subr.mxu0 0.0
    %1000 = vmatpush1.msra.mxu0 0.0
    %1001 = vmatprep.subr.mxu0 0.0
    %1002 = vmatpush1.msra.mxu0 0.0
    %1003 = vmatprep.subr.mxu0 0.0
    %1004 = vmatpush1.msra.mxu0 0.0
    %1005 = vmatprep.subr.mxu0 0.0
    %1006 = vmatpush1.msra.mxu0 0.0
    %1007 = vmatprep.subr.mxu0 0.0
    %1008 = vmatpush1.msra.mxu0 0.0
    %1009 = vmatprep.subr.mxu0 0.0
    %1010 = vmatpush1.msra.mxu0 0.0
    %1011 = vmatprep.subr.mxu0 0.0
    %1012 = vmatpush1.msra.mxu0 0.0
    %1013 = vmatprep.subr.mxu0 0.0
    %1014 = vmatpush1.msra.mxu0 0.0
    %1015 = vmatprep.subr.mxu0 0.0
    %1016 = vmatpush1.msra.mxu0 0.0
    %1017 = vmatprep.subr.mxu0 0.0
    %1018 = vmatpush1.msra.mxu0 0.0
    %1019 = vmatprep.mubr.f32.mxu0 0.0
    %1020 = vmatmul.mubr.f32.gmra.mrb[0].mxu0 %v953
    %v1021 = vpop.f32.mrb[0].mxu0
    %v1022 = vadd.f32 0.0, %v1021
    %v1023 = vpop.f32.mrb[0].mxu0
    %1024 = vdwg.mxu0
    %v1026 = vrot.slane %v1022, 2
    %v1028 = vadd.f32 %v178, %v1026
    %v1029 = vxor.u32 %v1028, 2147483648
    %v1030 = vmul.f32 %v1029, 1.442695
    %v1031 = vpow.pop %v1030
    %v1032 = vadd.f32 %v1031, 1.0
    %v1033 = vrcp.pop %v1032
    %v1034 = vmul.f32 1.0, %v1033
    %v1035 = vtanh.pop %v1028
    %v1037 = vrot.slane %v938, 6
    %v1039 = vmul.f32 %v1034, %v1037
    %1041 = vrot.lane.b32.xlu0 %v1035, 64
    %v1042 = vpop.permute.xlu0 %1041
    %v1044 = vmul.f32 %v1034, %v1042
    %1046 = vrot.lane.b32.xlu0 %v1044, 32
    %v1047 = vpop.permute.xlu0 %1046
    %v1049 = vadd.f32 %v1039, %v1047
    %v1050 = vtanh.pop %v1049
    %1052 = vrot.lane.b32.xlu0 %v1050, 64
    %v1053 = vpop.permute.xlu0 %1052
    %v1055 = vmul.f32 %v1034, %v1053
    %1057 = vrot.lane.b32.xlu0 %v1055, 32
    %v1058 = vpop.permute.xlu0 %1057
    %1060 = vst.msk [vmem:[#allocation2 + $0x8] sm:$0xc0] %vm621, %v1058
    %v1061 = vld [vmem:[#allocation2] sm:$0xff]
    %v1062 = vld [vmem:[#allocation2 + $0x8] sm:$0xff]
    %v1063 = vld [vmem:[#allocation8] sm:$0xff]
    %v1064 = vld [vmem:[#allocation8 + $0x8] sm:$0xff]
    %v1065 = vld [vmem:[#allocation8 + $0x10] sm:$0xff]
    %v1066 = vld [vmem:[#allocation8 + $0x18] sm:$0xff]
    %v1067 = vld [vmem:[%s6] sm:$0x1]
    %v1069 = vlaneseq
    %v1070 = vshrl.u32 %v1069, 7
    %v1071 = vsub.s32 0, %v1070
    %v1072 = vrot.slane %v1067, %v1071
    %v1075 = vsel %vm185, %v1061, 0
    %v1078 = vsel %vm185, %v1062, 0
    %1080 = vmatprep.subr.mxu0 0.0
    %1081 = vmatpush1.msra.mxu0 %v1063
    %1082 = vmatprep.subr.mxu0 0.0
    %1083 = vmatpush1.msra.mxu0 %v1064
    %1084 = vmatprep.subr.mxu0 0.0
    %1085 = vmatpush1.msra.mxu0 %v1065
    %1086 = vmatprep.subr.mxu0 0.0
    %1087 = vmatpush1.msra.mxu0 %v1066
    %1088 = vmatprep.subr.mxu0 0.0
    %1089 = vmatpush1.msra.mxu0 0.0
    %1090 = vmatprep.subr.mxu0 0.0
    %1091 = vmatpush1.msra.mxu0 0.0
    %1092 = vmatprep.subr.mxu0 0.0
    %1093 = vmatpush1.msra.mxu0 0.0
    %1094 = vmatprep.subr.mxu0 0.0
    %1095 = vmatpush1.msra.mxu0 0.0
    %1096 = vmatprep.subr.mxu0 0.0
    %1097 = vmatpush1.msra.mxu0 0.0
    %1098 = vmatprep.subr.mxu0 0.0
    %1099 = vmatpush1.msra.mxu0 0.0
    %1100 = vmatprep.subr.mxu0 0.0
    %1101 = vmatpush1.msra.mxu0 0.0
    %1102 = vmatprep.subr.mxu0 0.0
    %1103 = vmatpush1.msra.mxu0 0.0
    %1104 = vmatprep.subr.mxu0 0.0
    %1105 = vmatpush1.msra.mxu0 0.0
    %1106 = vmatprep.subr.mxu0 0.0
    %1107 = vmatpush1.msra.mxu0 0.0
    %1108 = vmatprep.subr.mxu0 0.0
    %1109 = vmatpush1.msra.mxu0 0.0
    %1110 = vmatprep.subr.mxu0 0.0
    %1111 = vmatpush1.msra.mxu0 0.0
    %1112 = vmatprep.subr.mxu0 0.0
    %1113 = vmatpush1.msra.mxu0 0.0
    %1114 = vmatprep.subr.mxu0 0.0
    %1115 = vmatpush1.msra.mxu0 0.0
    %1116 = vmatprep.subr.mxu0 0.0
    %1117 = vmatpush1.msra.mxu0 0.0
    %1118 = vmatprep.subr.mxu0 0.0
    %1119 = vmatpush1.msra.mxu0 0.0
    %1120 = vmatprep.subr.mxu0 0.0
    %1121 = vmatpush1.msra.mxu0 0.0
    %1122 = vmatprep.subr.mxu0 0.0
    %1123 = vmatpush1.msra.mxu0 0.0
    %1124 = vmatprep.subr.mxu0 0.0
    %1125 = vmatpush1.msra.mxu0 0.0
    %1126 = vmatprep.subr.mxu0 0.0
    %1127 = vmatpush1.msra.mxu0 0.0
    %1128 = vmatprep.subr.mxu0 0.0
    %1129 = vmatpush1.msra.mxu0 0.0
    %1130 = vmatprep.subr.mxu0 0.0
    %1131 = vmatpush1.msra.mxu0 0.0
    %1132 = vmatprep.subr.mxu0 0.0
    %1133 = vmatpush1.msra.mxu0 0.0
    %1134 = vmatprep.subr.mxu0 0.0
    %1135 = vmatpush1.msra.mxu0 0.0
    %1136 = vmatprep.subr.mxu0 0.0
    %1137 = vmatpush1.msra.mxu0 0.0
    %1138 = vmatprep.subr.mxu0 0.0
    %1139 = vmatpush1.msra.mxu0 0.0
    %1140 = vmatprep.subr.mxu0 0.0
    %1141 = vmatpush1.msra.mxu0 0.0
    %1142 = vmatprep.subr.mxu0 0.0
    %1143 = vmatpush1.msra.mxu0 0.0
    %1144 = vmatprep.mubr.f32.mxu0 0.0
    %1145 = vmatmul.mubr.f32.gmra.mrb[0].mxu0 %v1075
    %v1146 = vpop.f32.mrb[0].mxu0
    %v1147 = vadd.f32 %v1072, %v1146
    %v1148 = vpop.f32.mrb[0].mxu0
    %1149 = vmatprep.mubr.f32.mxu0 0.0
    %1150 = vmatmul.mubr.f32.gmra.mrb[0].mxu0 %v1078
    %v1151 = vpop.f32.mrb[0].mxu0
    %v1152 = vadd.f32 %v1072, %v1151
    %v1153 = vpop.f32.mrb[0].mxu0
    %1154 = vdwg.mxu0
    %v1155 = vld [vmem:[#allocation9] sm:$0xff]
    %v1156 = vld [vmem:[#allocation9 + $0x8] sm:$0xff]
    %v1157 = vld [vmem:[#allocation9 + $0x10] sm:$0xff]
    %v1158 = vld [vmem:[#allocation9 + $0x18] sm:$0xff]
    %1159 = vmatprep.subr.mxu0 0.0
    %1160 = vmatpush1.msra.mxu0 %v1155
    %1161 = vmatprep.subr.mxu0 0.0
    %1162 = vmatpush1.msra.mxu0 %v1156
    %1163 = vmatprep.subr.mxu0 0.0
    %1164 = vmatpush1.msra.mxu0 %v1157
    %1165 = vmatprep.subr.mxu0 0.0
    %1166 = vmatpush1.msra.mxu0 %v1158
    %1167 = vmatprep.subr.mxu0 0.0
    %1168 = vmatpush1.msra.mxu0 0.0
    %1169 = vmatprep.subr.mxu0 0.0
    %1170 = vmatpush1.msra.mxu0 0.0
    %1171 = vmatprep.subr.mxu0 0.0
    %1172 = vmatpush1.msra.mxu0 0.0
    %1173 = vmatprep.subr.mxu0 0.0
    %1174 = vmatpush1.msra.mxu0 0.0
    %1175 = vmatprep.subr.mxu0 0.0
    %1176 = vmatpush1.msra.mxu0 0.0
    %1177 = vmatprep.subr.mxu0 0.0
    %1178 = vmatpush1.msra.mxu0 0.0
    %1179 = vmatprep.subr.mxu0 0.0
    %1180 = vmatpush1.msra.mxu0 0.0
    %1181 = vmatprep.subr.mxu0 0.0
    %1182 = vmatpush1.msra.mxu0 0.0
    %1183 = vmatprep.subr.mxu0 0.0
    %1184 = vmatpush1.msra.mxu0 0.0
    %1185 = vmatprep.subr.mxu0 0.0
    %1186 = vmatpush1.msra.mxu0 0.0
    %1187 = vmatprep.subr.mxu0 0.0
    %1188 = vmatpush1.msra.mxu0 0.0
    %1189 = vmatprep.subr.mxu0 0.0
    %1190 = vmatpush1.msra.mxu0 0.0
    %1191 = vmatprep.subr.mxu0 0.0
    %1192 = vmatpush1.msra.mxu0 0.0
    %1193 = vmatprep.subr.mxu0 0.0
    %1194 = vmatpush1.msra.mxu0 0.0
    %1195 = vmatprep.subr.mxu0 0.0
    %1196 = vmatpush1.msra.mxu0 0.0
    %1197 = vmatprep.subr.mxu0 0.0
    %1198 = vmatpush1.msra.mxu0 0.0
    %1199 = vmatprep.subr.mxu0 0.0
    %1200 = vmatpush1.msra.mxu0 0.0
    %1201 = vmatprep.subr.mxu0 0.0
    %1202 = vmatpush1.msra.mxu0 0.0
    %1203 = vmatprep.subr.mxu0 0.0
    %1204 = vmatpush1.msra.mxu0 0.0
    %1205 = vmatprep.subr.mxu0 0.0
    %1206 = vmatpush1.msra.mxu0 0.0
    %1207 = vmatprep.subr.mxu0 0.0
    %1208 = vmatpush1.msra.mxu0 0.0
    %1209 = vmatprep.subr.mxu0 0.0
    %1210 = vmatpush1.msra.mxu0 0.0
    %1211 = vmatprep.subr.mxu0 0.0
    %1212 = vmatpush1.msra.mxu0 0.0
    %1213 = vmatprep.subr.mxu0 0.0
    %1214 = vmatpush1.msra.mxu0 0.0
    %1215 = vmatprep.subr.mxu0 0.0
    %1216 = vmatpush1.msra.mxu0 0.0
    %1217 = vmatprep.subr.mxu0 0.0
    %1218 = vmatpush1.msra.mxu0 0.0
    %1219 = vmatprep.subr.mxu0 0.0
    %1220 = vmatpush1.msra.mxu0 0.0
    %1221 = vmatprep.subr.mxu0 0.0
    %1222 = vmatpush1.msra.mxu0 0.0
    %1223 = vmatprep.mubr.f32.mxu0 0.0
    %1224 = vmatmul.mubr.f32.gmra.mrb[0].mxu0 %v187
    %v1225 = vpop.f32.mrb[0].mxu0
    %v1226 = vadd.f32 0.0, %v1225
    %v1227 = vpop.f32.mrb[0].mxu0
    %1228 = vdwg.mxu0
    %v1229 = vadd.f32 %v1147, %v1226
    %v1230 = vxor.u32 %v1229, 2147483648
    %v1231 = vmul.f32 %v1230, 1.442695
    %v1232 = vpow.pop %v1231
    %v1233 = vadd.f32 %v1232, 1.0
    %v1234 = vrcp.pop %v1233
    %v1235 = vmul.f32 1.0, %v1234
    %v1236 = vtanh.pop %v1229
    %v1237 = vmul.f32 %v1235, 0.0
    %1239 = vrot.lane.b32.xlu0 %v1236, 64
    %v1240 = vpop.permute.xlu0 %1239
    %v1242 = vmul.f32 %v1235, %v1240
    %1244 = vrot.lane.b32.xlu0 %v1242, 32
    %v1245 = vpop.permute.xlu0 %1244
    %v1247 = vadd.f32 %v1237, %v1245
    %v1248 = vtanh.pop %v1247
    %1250 = vrot.lane.b32.xlu0 %v1248, 64
    %v1251 = vpop.permute.xlu0 %1250
    %v1253 = vmul.f32 %v1235, %v1251
    %1255 = vrot.lane.b32.xlu0 %v1253, 32
    %v1256 = vpop.permute.xlu0 %1255
    %v1257 = vsel %vm185, %v1256, 0
    %1259 = vmatprep.subr.mxu0 0.0
    %1260 = vmatpush1.msra.mxu0 %v1155
    %1261 = vmatprep.subr.mxu0 0.0
    %1262 = vmatpush1.msra.mxu0 %v1156
    %1263 = vmatprep.subr.mxu0 0.0
    %1264 = vmatpush1.msra.mxu0 %v1157
    %1265 = vmatprep.subr.mxu0 0.0
    %1266 = vmatpush1.msra.mxu0 %v1158
    %1267 = vmatprep.subr.mxu0 0.0
    %1268 = vmatpush1.msra.mxu0 0.0
    %1269 = vmatprep.subr.mxu0 0.0
    %1270 = vmatpush1.msra.mxu0 0.0
    %1271 = vmatprep.subr.mxu0 0.0
    %1272 = vmatpush1.msra.mxu0 0.0
    %1273 = vmatprep.subr.mxu0 0.0
    %1274 = vmatpush1.msra.mxu0 0.0
    %1275 = vmatprep.subr.mxu0 0.0
    %1276 = vmatpush1.msra.mxu0 0.0
    %1277 = vmatprep.subr.mxu0 0.0
    %1278 = vmatpush1.msra.mxu0 0.0
    %1279 = vmatprep.subr.mxu0 0.0
    %1280 = vmatpush1.msra.mxu0 0.0
    %1281 = vmatprep.subr.mxu0 0.0
    %1282 = vmatpush1.msra.mxu0 0.0
    %1283 = vmatprep.subr.mxu0 0.0
    %1284 = vmatpush1.msra.mxu0 0.0
    %1285 = vmatprep.subr.mxu0 0.0
    %1286 = vmatpush1.msra.mxu0 0.0
    %1287 = vmatprep.subr.mxu0 0.0
    %1288 = vmatpush1.msra.mxu0 0.0
    %1289 = vmatprep.subr.mxu0 0.0
    %1290 = vmatpush1.msra.mxu0 0.0
    %1291 = vmatprep.subr.mxu0 0.0
    %1292 = vmatpush1.msra.mxu0 0.0
    %1293 = vmatprep.subr.mxu0 0.0
    %1294 = vmatpush1.msra.mxu0 0.0
    %1295 = vmatprep.subr.mxu0 0.0
    %1296 = vmatpush1.msra.mxu0 0.0
    %1297 = vmatprep.subr.mxu0 0.0
    %1298 = vmatpush1.msra.mxu0 0.0
    %1299 = vmatprep.subr.mxu0 0.0
    %1300 = vmatpush1.msra.mxu0 0.0
    %1301 = vmatprep.subr.mxu0 0.0
    %1302 = vmatpush1.msra.mxu0 0.0
    %1303 = vmatprep.subr.mxu0 0.0
    %1304 = vmatpush1.msra.mxu0 0.0
    %1305 = vmatprep.subr.mxu0 0.0
    %1306 = vmatpush1.msra.mxu0 0.0
    %1307 = vmatprep.subr.mxu0 0.0
    %1308 = vmatpush1.msra.mxu0 0.0
    %1309 = vmatprep.subr.mxu0 0.0
    %1310 = vmatpush1.msra.mxu0 0.0
    %1311 = vmatprep.subr.mxu0 0.0
    %1312 = vmatpush1.msra.mxu0 0.0
    %1313 = vmatprep.subr.mxu0 0.0
    %1314 = vmatpush1.msra.mxu0 0.0
    %1315 = vmatprep.subr.mxu0 0.0
    %1316 = vmatpush1.msra.mxu0 0.0
    %1317 = vmatprep.subr.mxu0 0.0
    %1318 = vmatpush1.msra.mxu0 0.0
    %1319 = vmatprep.subr.mxu0 0.0
    %1320 = vmatpush1.msra.mxu0 0.0
    %1321 = vmatprep.subr.mxu0 0.0
    %1322 = vmatpush1.msra.mxu0 0.0
    %1323 = vmatprep.mubr.f32.mxu0 0.0
    %1324 = vmatmul.mubr.f32.gmra.mrb[0].mxu0 %v1257
    %v1325 = vpop.f32.mrb[0].mxu0
    %v1326 = vadd.f32 0.0, %v1325
    %v1327 = vpop.f32.mrb[0].mxu0
    %1328 = vdwg.mxu0
    %v1330 = vrot.slane %v1326, 6
    %v1332 = vadd.f32 %v1147, %v1330
    %v1333 = vxor.u32 %v1332, 2147483648
    %v1334 = vmul.f32 %v1333, 1.442695
    %v1335 = vpow.pop %v1334
    %v1336 = vadd.f32 %v1335, 1.0
    %v1337 = vrcp.pop %v1336
    %v1338 = vmul.f32 1.0, %v1337
    %v1339 = vtanh.pop %v1332
    %v1341 = vrot.slane %v1247, 6
    %v1343 = vmul.f32 %v1338, %v1341
    %1345 = vrot.lane.b32.xlu0 %v1339, 64
    %v1346 = vpop.permute.xlu0 %1345
    %v1348 = vmul.f32 %v1338, %v1346
    %1350 = vrot.lane.b32.xlu0 %v1348, 32
    %v1351 = vpop.permute.xlu0 %1350
    %v1353 = vadd.f32 %v1343, %v1351
    %v1354 = vtanh.pop %v1353
    %1356 = vrot.lane.b32.xlu0 %v1354, 64
    %v1357 = vpop.permute.xlu0 %1356
    %v1359 = vmul.f32 %v1338, %v1357
    %v1361 = vrot.slane %v1359, 2
    %1362 = vrot.lane.b32.xlu0 %v1361, 32
    %v1363 = vpop.permute.xlu0 %1362
    %v1364 = vsel %vm185, %v1363, 0
    %1366 = vmatprep.subr.mxu0 0.0
    %1367 = vmatpush1.msra.mxu0 %v1155
    %1368 = vmatprep.subr.mxu0 0.0
    %1369 = vmatpush1.msra.mxu0 %v1156
    %1370 = vmatprep.subr.mxu0 0.0
    %1371 = vmatpush1.msra.mxu0 %v1157
    %1372 = vmatprep.subr.mxu0 0.0
    %1373 = vmatpush1.msra.mxu0 %v1158
    %1374 = vmatprep.subr.mxu0 0.0
    %1375 = vmatpush1.msra.mxu0 0.0
    %1376 = vmatprep.subr.mxu0 0.0
    %1377 = vmatpush1.msra.mxu0 0.0
    %1378 = vmatprep.subr.mxu0 0.0
    %1379 = vmatpush1.msra.mxu0 0.0
    %1380 = vmatprep.subr.mxu0 0.0
    %1381 = vmatpush1.msra.mxu0 0.0
    %1382 = vmatprep.subr.mxu0 0.0
    %1383 = vmatpush1.msra.mxu0 0.0
    %1384 = vmatprep.subr.mxu0 0.0
    %1385 = vmatpush1.msra.mxu0 0.0
    %1386 = vmatprep.subr.mxu0 0.0
    %1387 = vmatpush1.msra.mxu0 0.0
    %1388 = vmatprep.subr.mxu0 0.0
    %1389 = vmatpush1.msra.mxu0 0.0
    %1390 = vmatprep.subr.mxu0 0.0
    %1391 = vmatpush1.msra.mxu0 0.0
    %1392 = vmatprep.subr.mxu0 0.0
    %1393 = vmatpush1.msra.mxu0 0.0
    %1394 = vmatprep.subr.mxu0 0.0
    %1395 = vmatpush1.msra.mxu0 0.0
    %1396 = vmatprep.subr.mxu0 0.0
    %1397 = vmatpush1.msra.mxu0 0.0
    %1398 = vmatprep.subr.mxu0 0.0
    %1399 = vmatpush1.msra.mxu0 0.0
    %1400 = vmatprep.subr.mxu0 0.0
    %1401 = vmatpush1.msra.mxu0 0.0
    %1402 = vmatprep.subr.mxu0 0.0
    %1403 = vmatpush1.msra.mxu0 0.0
    %1404 = vmatprep.subr.mxu0 0.0
    %1405 = vmatpush1.msra.mxu0 0.0
    %1406 = vmatprep.subr.mxu0 0.0
    %1407 = vmatpush1.msra.mxu0 0.0
    %1408 = vmatprep.subr.mxu0 0.0
    %1409 = vmatpush1.msra.mxu0 0.0
    %1410 = vmatprep.subr.mxu0 0.0
    %1411 = vmatpush1.msra.mxu0 0.0
    %1412 = vmatprep.subr.mxu0 0.0
    %1413 = vmatpush1.msra.mxu0 0.0
    %1414 = vmatprep.subr.mxu0 0.0
    %1415 = vmatpush1.msra.mxu0 0.0
    %1416 = vmatprep.subr.mxu0 0.0
    %1417 = vmatpush1.msra.mxu0 0.0
    %1418 = vmatprep.subr.mxu0 0.0
    %1419 = vmatpush1.msra.mxu0 0.0
    %1420 = vmatprep.subr.mxu0 0.0
    %1421 = vmatpush1.msra.mxu0 0.0
    %1422 = vmatprep.subr.mxu0 0.0
    %1423 = vmatpush1.msra.mxu0 0.0
    %1424 = vmatprep.subr.mxu0 0.0
    %1425 = vmatpush1.msra.mxu0 0.0
    %1426 = vmatprep.subr.mxu0 0.0
    %1427 = vmatpush1.msra.mxu0 0.0
    %1428 = vmatprep.subr.mxu0 0.0
    %1429 = vmatpush1.msra.mxu0 0.0
    %1430 = vmatprep.mubr.f32.mxu0 0.0
    %1431 = vmatmul.mubr.f32.gmra.mrb[0].mxu0 %v1364
    %v1432 = vpop.f32.mrb[0].mxu0
    %v1433 = vadd.f32 0.0, %v1432
    %v1434 = vpop.f32.mrb[0].mxu0
    %1435 = vdwg.mxu0
    %v1437 = vrot.slane %v1433, 4
    %v1439 = vadd.f32 %v1147, %v1437
    %v1440 = vxor.u32 %v1439, 2147483648
    %v1441 = vmul.f32 %v1440, 1.442695
    %v1442 = vpow.pop %v1441
    %v1443 = vadd.f32 %v1442, 1.0
    %v1444 = vrcp.pop %v1443
    %v1445 = vmul.f32 1.0, %v1444
    %v1446 = vtanh.pop %v1439
    %v1448 = vrot.slane %v1353, 6
    %v1450 = vmul.f32 %v1445, %v1448
    %1452 = vrot.lane.b32.xlu0 %v1446, 64
    %v1453 = vpop.permute.xlu0 %1452
    %v1455 = vmul.f32 %v1445, %v1453
    %1457 = vrot.lane.b32.xlu0 %v1455, 32
    %v1458 = vpop.permute.xlu0 %1457
    %v1460 = vadd.f32 %v1450, %v1458
    %v1461 = vtanh.pop %v1460
    %1463 = vrot.lane.b32.xlu0 %v1461, 64
    %v1464 = vpop.permute.xlu0 %1463
    %v1466 = vmul.f32 %v1445, %v1464
    %v1468 = vrot.slane %v1466, 4
    %1469 = vrot.lane.b32.xlu0 %v1468, 32
    %v1470 = vpop.permute.xlu0 %1469
    %v1471 = vsel %vm185, %v1470, 0
    %1473 = vmatprep.subr.mxu0 0.0
    %1474 = vmatpush1.msra.mxu0 %v1155
    %1475 = vmatprep.subr.mxu0 0.0
    %1476 = vmatpush1.msra.mxu0 %v1156
    %1477 = vmatprep.subr.mxu0 0.0
    %1478 = vmatpush1.msra.mxu0 %v1157
    %1479 = vmatprep.subr.mxu0 0.0
    %1480 = vmatpush1.msra.mxu0 %v1158
    %1481 = vmatprep.subr.mxu0 0.0
    %1482 = vmatpush1.msra.mxu0 0.0
    %1483 = vmatprep.subr.mxu0 0.0
    %1484 = vmatpush1.msra.mxu0 0.0
    %1485 = vmatprep.subr.mxu0 0.0
    %1486 = vmatpush1.msra.mxu0 0.0
    %1487 = vmatprep.subr.mxu0 0.0
    %1488 = vmatpush1.msra.mxu0 0.0
    %1489 = vmatprep.subr.mxu0 0.0
    %1490 = vmatpush1.msra.mxu0 0.0
    %1491 = vmatprep.subr.mxu0 0.0
    %1492 = vmatpush1.msra.mxu0 0.0
    %1493 = vmatprep.subr.mxu0 0.0
    %1494 = vmatpush1.msra.mxu0 0.0
    %1495 = vmatprep.subr.mxu0 0.0
    %1496 = vmatpush1.msra.mxu0 0.0
    %1497 = vmatprep.subr.mxu0 0.0
    %1498 = vmatpush1.msra.mxu0 0.0
    %1499 = vmatprep.subr.mxu0 0.0
    %1500 = vmatpush1.msra.mxu0 0.0
    %1501 = vmatprep.subr.mxu0 0.0
    %1502 = vmatpush1.msra.mxu0 0.0
    %1503 = vmatprep.subr.mxu0 0.0
    %1504 = vmatpush1.msra.mxu0 0.0
    %1505 = vmatprep.subr.mxu0 0.0
    %1506 = vmatpush1.msra.mxu0 0.0
    %1507 = vmatprep.subr.mxu0 0.0
    %1508 = vmatpush1.msra.mxu0 0.0
    %1509 = vmatprep.subr.mxu0 0.0
    %1510 = vmatpush1.msra.mxu0 0.0
    %1511 = vmatprep.subr.mxu0 0.0
    %1512 = vmatpush1.msra.mxu0 0.0
    %1513 = vmatprep.subr.mxu0 0.0
    %1514 = vmatpush1.msra.mxu0 0.0
    %1515 = vmatprep.subr.mxu0 0.0
    %1516 = vmatpush1.msra.mxu0 0.0
    %1517 = vmatprep.subr.mxu0 0.0
    %1518 = vmatpush1.msra.mxu0 0.0
    %1519 = vmatprep.subr.mxu0 0.0
    %1520 = vmatpush1.msra.mxu0 0.0
    %1521 = vmatprep.subr.mxu0 0.0
    %1522 = vmatpush1.msra.mxu0 0.0
    %1523 = vmatprep.subr.mxu0 0.0
    %1524 = vmatpush1.msra.mxu0 0.0
    %1525 = vmatprep.subr.mxu0 0.0
    %1526 = vmatpush1.msra.mxu0 0.0
    %1527 = vmatprep.subr.mxu0 0.0
    %1528 = vmatpush1.msra.mxu0 0.0
    %1529 = vmatprep.subr.mxu0 0.0
    %1530 = vmatpush1.msra.mxu0 0.0
    %1531 = vmatprep.subr.mxu0 0.0
    %1532 = vmatpush1.msra.mxu0 0.0
    %1533 = vmatprep.subr.mxu0 0.0
    %1534 = vmatpush1.msra.mxu0 0.0
    %1535 = vmatprep.subr.mxu0 0.0
    %1536 = vmatpush1.msra.mxu0 0.0
    %1537 = vmatprep.mubr.f32.mxu0 0.0
    %1538 = vmatmul.mubr.f32.gmra.mrb[0].mxu0 %v1471
    %v1539 = vpop.f32.mrb[0].mxu0
    %v1540 = vadd.f32 0.0, %v1539
    %v1541 = vpop.f32.mrb[0].mxu0
    %1542 = vdwg.mxu0
    %v1544 = vrot.slane %v1540, 2
    %v1546 = vadd.f32 %v1147, %v1544
    %v1547 = vxor.u32 %v1546, 2147483648
    %v1548 = vmul.f32 %v1547, 1.442695
    %v1549 = vpow.pop %v1548
    %v1550 = vadd.f32 %v1549, 1.0
    %v1551 = vrcp.pop %v1550
    %v1552 = vmul.f32 1.0, %v1551
    %v1553 = vtanh.pop %v1546
    %v1555 = vrot.slane %v1460, 6
    %v1557 = vmul.f32 %v1552, %v1555
    %1559 = vrot.lane.b32.xlu0 %v1553, 64
    %v1560 = vpop.permute.xlu0 %1559
    %v1562 = vmul.f32 %v1552, %v1560
    %1564 = vrot.lane.b32.xlu0 %v1562, 32
    %v1565 = vpop.permute.xlu0 %1564
    %v1567 = vadd.f32 %v1557, %v1565
    %v1568 = vtanh.pop %v1567
    %1570 = vrot.lane.b32.xlu0 %v1568, 64
    %v1571 = vpop.permute.xlu0 %1570
    %v1573 = vmul.f32 %v1552, %v1571
    %v1575 = vrot.slane %v1573, 6
    %1576 = vrot.lane.b32.xlu0 %v1575, 32
    %v1577 = vpop.permute.xlu0 %1576
    %v1578 = vsel %vm185, %v1577, 0
    %1580 = vmatprep.subr.mxu0 0.0
    %1581 = vmatpush1.msra.mxu0 %v1155
    %1582 = vmatprep.subr.mxu0 0.0
    %1583 = vmatpush1.msra.mxu0 %v1156
    %1584 = vmatprep.subr.mxu0 0.0
    %1585 = vmatpush1.msra.mxu0 %v1157
    %1586 = vmatprep.subr.mxu0 0.0
    %1587 = vmatpush1.msra.mxu0 %v1158
    %1588 = vmatprep.subr.mxu0 0.0
    %1589 = vmatpush1.msra.mxu0 0.0
    %1590 = vmatprep.subr.mxu0 0.0
    %1591 = vmatpush1.msra.mxu0 0.0
    %1592 = vmatprep.subr.mxu0 0.0
    %1593 = vmatpush1.msra.mxu0 0.0
    %1594 = vmatprep.subr.mxu0 0.0
    %1595 = vmatpush1.msra.mxu0 0.0
    %1596 = vmatprep.subr.mxu0 0.0
    %1597 = vmatpush1.msra.mxu0 0.0
    %1598 = vmatprep.subr.mxu0 0.0
    %1599 = vmatpush1.msra.mxu0 0.0
    %1600 = vmatprep.subr.mxu0 0.0
    %1601 = vmatpush1.msra.mxu0 0.0
    %1602 = vmatprep.subr.mxu0 0.0
    %1603 = vmatpush1.msra.mxu0 0.0
    %1604 = vmatprep.subr.mxu0 0.0
    %1605 = vmatpush1.msra.mxu0 0.0
    %1606 = vmatprep.subr.mxu0 0.0
    %1607 = vmatpush1.msra.mxu0 0.0
    %1608 = vmatprep.subr.mxu0 0.0
    %1609 = vmatpush1.msra.mxu0 0.0
    %1610 = vmatprep.subr.mxu0 0.0
    %1611 = vmatpush1.msra.mxu0 0.0
    %1612 = vmatprep.subr.mxu0 0.0
    %1613 = vmatpush1.msra.mxu0 0.0
    %1614 = vmatprep.subr.mxu0 0.0
    %1615 = vmatpush1.msra.mxu0 0.0
    %1616 = vmatprep.subr.mxu0 0.0
    %1617 = vmatpush1.msra.mxu0 0.0
    %1618 = vmatprep.subr.mxu0 0.0
    %1619 = vmatpush1.msra.mxu0 0.0
    %1620 = vmatprep.subr.mxu0 0.0
    %1621 = vmatpush1.msra.mxu0 0.0
    %1622 = vmatprep.subr.mxu0 0.0
    %1623 = vmatpush1.msra.mxu0 0.0
    %1624 = vmatprep.subr.mxu0 0.0
    %1625 = vmatpush1.msra.mxu0 0.0
    %1626 = vmatprep.subr.mxu0 0.0
    %1627 = vmatpush1.msra.mxu0 0.0
    %1628 = vmatprep.subr.mxu0 0.0
    %1629 = vmatpush1.msra.mxu0 0.0
    %1630 = vmatprep.subr.mxu0 0.0
    %1631 = vmatpush1.msra.mxu0 0.0
    %1632 = vmatprep.subr.mxu0 0.0
    %1633 = vmatpush1.msra.mxu0 0.0
    %1634 = vmatprep.subr.mxu0 0.0
    %1635 = vmatpush1.msra.mxu0 0.0
    %1636 = vmatprep.subr.mxu0 0.0
    %1637 = vmatpush1.msra.mxu0 0.0
    %1638 = vmatprep.subr.mxu0 0.0
    %1639 = vmatpush1.msra.mxu0 0.0
    %1640 = vmatprep.subr.mxu0 0.0
    %1641 = vmatpush1.msra.mxu0 0.0
    %1642 = vmatprep.subr.mxu0 0.0
    %1643 = vmatpush1.msra.mxu0 0.0
    %1644 = vmatprep.mubr.f32.mxu0 0.0
    %1645 = vmatmul.mubr.f32.gmra.mrb[0].mxu0 %v1578
    %v1646 = vpop.f32.mrb[0].mxu0
    %v1647 = vadd.f32 0.0, %v1646
    %v1648 = vpop.f32.mrb[0].mxu0
    %1649 = vdwg.mxu0
    %v1650 = vadd.f32 %v1152, %v1647
    %v1651 = vxor.u32 %v1650, 2147483648
    %v1652 = vmul.f32 %v1651, 1.442695
    %v1653 = vpow.pop %v1652
    %v1654 = vadd.f32 %v1653, 1.0
    %v1655 = vrcp.pop %v1654
    %v1656 = vmul.f32 1.0, %v1655
    %v1657 = vtanh.pop %v1650
    %v1659 = vrot.slane %v1567, 6
    %v1661 = vmul.f32 %v1656, %v1659
    %1663 = vrot.lane.b32.xlu0 %v1657, 64
    %v1664 = vpop.permute.xlu0 %1663
    %v1666 = vmul.f32 %v1656, %v1664
    %1668 = vrot.lane.b32.xlu0 %v1666, 32
    %v1669 = vpop.permute.xlu0 %1668
    %v1671 = vadd.f32 %v1661, %v1669
    %v1672 = vtanh.pop %v1671
    %1674 = vrot.lane.b32.xlu0 %v1672, 64
    %v1675 = vpop.permute.xlu0 %1674
    %v1677 = vmul.f32 %v1656, %v1675
    %1679 = vrot.lane.b32.xlu0 %v1677, 32
    %v1680 = vpop.permute.xlu0 %1679
    %v1681 = vsel %vm185, %v1680, 0
    %1683 = vmatprep.subr.mxu0 0.0
    %1684 = vmatpush1.msra.mxu0 %v1155
    %1685 = vmatprep.subr.mxu0 0.0
    %1686 = vmatpush1.msra.mxu0 %v1156
    %1687 = vmatprep.subr.mxu0 0.0
    %1688 = vmatpush1.msra.mxu0 %v1157
    %1689 = vmatprep.subr.mxu0 0.0
    %1690 = vmatpush1.msra.mxu0 %v1158
    %1691 = vmatprep.subr.mxu0 0.0
    %1692 = vmatpush1.msra.mxu0 0.0
    %1693 = vmatprep.subr.mxu0 0.0
    %1694 = vmatpush1.msra.mxu0 0.0
    %1695 = vmatprep.subr.mxu0 0.0
    %1696 = vmatpush1.msra.mxu0 0.0
    %1697 = vmatprep.subr.mxu0 0.0
    %1698 = vmatpush1.msra.mxu0 0.0
    %1699 = vmatprep.subr.mxu0 0.0
    %1700 = vmatpush1.msra.mxu0 0.0
    %1701 = vmatprep.subr.mxu0 0.0
    %1702 = vmatpush1.msra.mxu0 0.0
    %1703 = vmatprep.subr.mxu0 0.0
    %1704 = vmatpush1.msra.mxu0 0.0
    %1705 = vmatprep.subr.mxu0 0.0
    %1706 = vmatpush1.msra.mxu0 0.0
    %1707 = vmatprep.subr.mxu0 0.0
    %1708 = vmatpush1.msra.mxu0 0.0
    %1709 = vmatprep.subr.mxu0 0.0
    %1710 = vmatpush1.msra.mxu0 0.0
    %1711 = vmatprep.subr.mxu0 0.0
    %1712 = vmatpush1.msra.mxu0 0.0
    %1713 = vmatprep.subr.mxu0 0.0
    %1714 = vmatpush1.msra.mxu0 0.0
    %1715 = vmatprep.subr.mxu0 0.0
    %1716 = vmatpush1.msra.mxu0 0.0
    %1717 = vmatprep.subr.mxu0 0.0
    %1718 = vmatpush1.msra.mxu0 0.0
    %1719 = vmatprep.subr.mxu0 0.0
    %1720 = vmatpush1.msra.mxu0 0.0
    %1721 = vmatprep.subr.mxu0 0.0
    %1722 = vmatpush1.msra.mxu0 0.0
    %1723 = vmatprep.subr.mxu0 0.0
    %1724 = vmatpush1.msra.mxu0 0.0
    %1725 = vmatprep.subr.mxu0 0.0
    %1726 = vmatpush1.msra.mxu0 0.0
    %1727 = vmatprep.subr.mxu0 0.0
    %1728 = vmatpush1.msra.mxu0 0.0
    %1729 = vmatprep.subr.mxu0 0.0
    %1730 = vmatpush1.msra.mxu0 0.0
    %1731 = vmatprep.subr.mxu0 0.0
    %1732 = vmatpush1.msra.mxu0 0.0
    %1733 = vmatprep.subr.mxu0 0.0
    %1734 = vmatpush1.msra.mxu0 0.0
    %1735 = vmatprep.subr.mxu0 0.0
    %1736 = vmatpush1.msra.mxu0 0.0
    %1737 = vmatprep.subr.mxu0 0.0
    %1738 = vmatpush1.msra.mxu0 0.0
    %1739 = vmatprep.subr.mxu0 0.0
    %1740 = vmatpush1.msra.mxu0 0.0
    %1741 = vmatprep.subr.mxu0 0.0
    %1742 = vmatpush1.msra.mxu0 0.0
    %1743 = vmatprep.subr.mxu0 0.0
    %1744 = vmatpush1.msra.mxu0 0.0
    %1745 = vmatprep.subr.mxu0 0.0
    %1746 = vmatpush1.msra.mxu0 0.0
    %1747 = vmatprep.mubr.f32.mxu0 0.0
    %1748 = vmatmul.mubr.f32.gmra.mrb[0].mxu0 %v1681
    %v1749 = vpop.f32.mrb[0].mxu0
    %v1750 = vadd.f32 0.0, %v1749
    %v1751 = vpop.f32.mrb[0].mxu0
    %1752 = vdwg.mxu0
    %v1754 = vrot.slane %v1750, 6
    %v1756 = vadd.f32 %v1152, %v1754
    %v1757 = vxor.u32 %v1756, 2147483648
    %v1758 = vmul.f32 %v1757, 1.442695
    %v1759 = vpow.pop %v1758
    %v1760 = vadd.f32 %v1759, 1.0
    %v1761 = vrcp.pop %v1760
    %v1762 = vmul.f32 1.0, %v1761
    %v1763 = vtanh.pop %v1756
    %v1765 = vrot.slane %v1671, 6
    %v1767 = vmul.f32 %v1762, %v1765
    %1769 = vrot.lane.b32.xlu0 %v1763, 64
    %v1770 = vpop.permute.xlu0 %1769
    %v1772 = vmul.f32 %v1762, %v1770
    %1774 = vrot.lane.b32.xlu0 %v1772, 32
    %v1775 = vpop.permute.xlu0 %1774
    %v1777 = vadd.f32 %v1767, %v1775
    %v1778 = vtanh.pop %v1777
    %1780 = vrot.lane.b32.xlu0 %v1778, 64
    %v1781 = vpop.permute.xlu0 %1780
    %v1783 = vmul.f32 %v1762, %v1781
    %v1785 = vrot.slane %v1783, 2
    %1786 = vrot.lane.b32.xlu0 %v1785, 32
    %v1787 = vpop.permute.xlu0 %1786
    %v1788 = vsel %vm185, %v1787, 0
    %1790 = vmatprep.subr.mxu0 0.0
    %1791 = vmatpush1.msra.mxu0 %v1155
    %1792 = vmatprep.subr.mxu0 0.0
    %1793 = vmatpush1.msra.mxu0 %v1156
    %1794 = vmatprep.subr.mxu0 0.0
    %1795 = vmatpush1.msra.mxu0 %v1157
    %1796 = vmatprep.subr.mxu0 0.0
    %1797 = vmatpush1.msra.mxu0 %v1158
    %1798 = vmatprep.subr.mxu0 0.0
    %1799 = vmatpush1.msra.mxu0 0.0
    %1800 = vmatprep.subr.mxu0 0.0
    %1801 = vmatpush1.msra.mxu0 0.0
    %1802 = vmatprep.subr.mxu0 0.0
    %1803 = vmatpush1.msra.mxu0 0.0
    %1804 = vmatprep.subr.mxu0 0.0
    %1805 = vmatpush1.msra.mxu0 0.0
    %1806 = vmatprep.subr.mxu0 0.0
    %1807 = vmatpush1.msra.mxu0 0.0
    %1808 = vmatprep.subr.mxu0 0.0
    %1809 = vmatpush1.msra.mxu0 0.0
    %1810 = vmatprep.subr.mxu0 0.0
    %1811 = vmatpush1.msra.mxu0 0.0
    %1812 = vmatprep.subr.mxu0 0.0
    %1813 = vmatpush1.msra.mxu0 0.0
    %1814 = vmatprep.subr.mxu0 0.0
    %1815 = vmatpush1.msra.mxu0 0.0
    %1816 = vmatprep.subr.mxu0 0.0
    %1817 = vmatpush1.msra.mxu0 0.0
    %1818 = vmatprep.subr.mxu0 0.0
    %1819 = vmatpush1.msra.mxu0 0.0
    %1820 = vmatprep.subr.mxu0 0.0
    %1821 = vmatpush1.msra.mxu0 0.0
    %1822 = vmatprep.subr.mxu0 0.0
    %1823 = vmatpush1.msra.mxu0 0.0
    %1824 = vmatprep.subr.mxu0 0.0
    %1825 = vmatpush1.msra.mxu0 0.0
    %1826 = vmatprep.subr.mxu0 0.0
    %1827 = vmatpush1.msra.mxu0 0.0
    %1828 = vmatprep.subr.mxu0 0.0
    %1829 = vmatpush1.msra.mxu0 0.0
    %1830 = vmatprep.subr.mxu0 0.0
    %1831 = vmatpush1.msra.mxu0 0.0
    %1832 = vmatprep.subr.mxu0 0.0
    %1833 = vmatpush1.msra.mxu0 0.0
    %1834 = vmatprep.subr.mxu0 0.0
    %1835 = vmatpush1.msra.mxu0 0.0
    %1836 = vmatprep.subr.mxu0 0.0
    %1837 = vmatpush1.msra.mxu0 0.0
    %1838 = vmatprep.subr.mxu0 0.0
    %1839 = vmatpush1.msra.mxu0 0.0
    %1840 = vmatprep.subr.mxu0 0.0
    %1841 = vmatpush1.msra.mxu0 0.0
    %1842 = vmatprep.subr.mxu0 0.0
    %1843 = vmatpush1.msra.mxu0 0.0
    %1844 = vmatprep.subr.mxu0 0.0
    %1845 = vmatpush1.msra.mxu0 0.0
    %1846 = vmatprep.subr.mxu0 0.0
    %1847 = vmatpush1.msra.mxu0 0.0
    %1848 = vmatprep.subr.mxu0 0.0
    %1849 = vmatpush1.msra.mxu0 0.0
    %1850 = vmatprep.subr.mxu0 0.0
    %1851 = vmatpush1.msra.mxu0 0.0
    %1852 = vmatprep.subr.mxu0 0.0
    %1853 = vmatpush1.msra.mxu0 0.0
    %1854 = vmatprep.mubr.f32.mxu0 0.0
    %1855 = vmatmul.mubr.f32.gmra.mrb[0].mxu0 %v1788
    %v1856 = vpop.f32.mrb[0].mxu0
    %v1857 = vadd.f32 0.0, %v1856
    %v1858 = vpop.f32.mrb[0].mxu0
    %1859 = vdwg.mxu0
    %v1861 = vrot.slane %v1857, 4
    %v1863 = vadd.f32 %v1152, %v1861
    %v1864 = vxor.u32 %v1863, 2147483648
    %v1865 = vmul.f32 %v1864, 1.442695
    %v1866 = vpow.pop %v1865
    %v1867 = vadd.f32 %v1866, 1.0
    %v1868 = vrcp.pop %v1867
    %v1869 = vmul.f32 1.0, %v1868
    %v1870 = vtanh.pop %v1863
    %v1872 = vrot.slane %v1777, 6
    %v1874 = vmul.f32 %v1869, %v1872
    %1876 = vrot.lane.b32.xlu0 %v1870, 64
    %v1877 = vpop.permute.xlu0 %1876
    %v1879 = vmul.f32 %v1869, %v1877
    %1881 = vrot.lane.b32.xlu0 %v1879, 32
    %v1882 = vpop.permute.xlu0 %1881
    %v1884 = vadd.f32 %v1874, %v1882
    %v1885 = vtanh.pop %v1884
    %1887 = vrot.lane.b32.xlu0 %v1885, 64
    %v1888 = vpop.permute.xlu0 %1887
    %v1890 = vmul.f32 %v1869, %v1888
    %v1892 = vrot.slane %v1890, 4
    %1893 = vrot.lane.b32.xlu0 %v1892, 32
    %v1894 = vpop.permute.xlu0 %1893
    %v1895 = vsel %vm185, %v1894, 0
    %1897 = vmatprep.subr.mxu0 0.0
    %1898 = vmatpush1.msra.mxu0 %v1155
    %1899 = vmatprep.subr.mxu0 0.0
    %1900 = vmatpush1.msra.mxu0 %v1156
    %1901 = vmatprep.subr.mxu0 0.0
    %1902 = vmatpush1.msra.mxu0 %v1157
    %1903 = vmatprep.subr.mxu0 0.0
    %1904 = vmatpush1.msra.mxu0 %v1158
    %1905 = vmatprep.subr.mxu0 0.0
    %1906 = vmatpush1.msra.mxu0 0.0
    %1907 = vmatprep.subr.mxu0 0.0
    %1908 = vmatpush1.msra.mxu0 0.0
    %1909 = vmatprep.subr.mxu0 0.0
    %1910 = vmatpush1.msra.mxu0 0.0
    %1911 = vmatprep.subr.mxu0 0.0
    %1912 = vmatpush1.msra.mxu0 0.0
    %1913 = vmatprep.subr.mxu0 0.0
    %1914 = vmatpush1.msra.mxu0 0.0
    %1915 = vmatprep.subr.mxu0 0.0
    %1916 = vmatpush1.msra.mxu0 0.0
    %1917 = vmatprep.subr.mxu0 0.0
    %1918 = vmatpush1.msra.mxu0 0.0
    %1919 = vmatprep.subr.mxu0 0.0
    %1920 = vmatpush1.msra.mxu0 0.0
    %1921 = vmatprep.subr.mxu0 0.0
    %1922 = vmatpush1.msra.mxu0 0.0
    %1923 = vmatprep.subr.mxu0 0.0
    %1924 = vmatpush1.msra.mxu0 0.0
    %1925 = vmatprep.subr.mxu0 0.0
    %1926 = vmatpush1.msra.mxu0 0.0
    %1927 = vmatprep.subr.mxu0 0.0
    %1928 = vmatpush1.msra.mxu0 0.0
    %1929 = vmatprep.subr.mxu0 0.0
    %1930 = vmatpush1.msra.mxu0 0.0
    %1931 = vmatprep.subr.mxu0 0.0
    %1932 = vmatpush1.msra.mxu0 0.0
    %1933 = vmatprep.subr.mxu0 0.0
    %1934 = vmatpush1.msra.mxu0 0.0
    %1935 = vmatprep.subr.mxu0 0.0
    %1936 = vmatpush1.msra.mxu0 0.0
    %1937 = vmatprep.subr.mxu0 0.0
    %1938 = vmatpush1.msra.mxu0 0.0
    %1939 = vmatprep.subr.mxu0 0.0
    %1940 = vmatpush1.msra.mxu0 0.0
    %1941 = vmatprep.subr.mxu0 0.0
    %1942 = vmatpush1.msra.mxu0 0.0
    %1943 = vmatprep.subr.mxu0 0.0
    %1944 = vmatpush1.msra.mxu0 0.0
    %1945 = vmatprep.subr.mxu0 0.0
    %1946 = vmatpush1.msra.mxu0 0.0
    %1947 = vmatprep.subr.mxu0 0.0
    %1948 = vmatpush1.msra.mxu0 0.0
    %1949 = vmatprep.subr.mxu0 0.0
    %1950 = vmatpush1.msra.mxu0 0.0
    %1951 = vmatprep.subr.mxu0 0.0
    %1952 = vmatpush1.msra.mxu0 0.0
    %1953 = vmatprep.subr.mxu0 0.0
    %1954 = vmatpush1.msra.mxu0 0.0
    %1955 = vmatprep.subr.mxu0 0.0
    %1956 = vmatpush1.msra.mxu0 0.0
    %1957 = vmatprep.subr.mxu0 0.0
    %1958 = vmatpush1.msra.mxu0 0.0
    %1959 = vmatprep.subr.mxu0 0.0
    %1960 = vmatpush1.msra.mxu0 0.0
    %1961 = vmatprep.mubr.f32.mxu0 0.0
    %1962 = vmatmul.mubr.f32.gmra.mrb[0].mxu0 %v1895
    %v1963 = vpop.f32.mrb[0].mxu0
    %v1964 = vadd.f32 0.0, %v1963
    %v1965 = vpop.f32.mrb[0].mxu0
    %1966 = vdwg.mxu0
    %v1968 = vrot.slane %v1964, 2
    %v1970 = vadd.f32 %v1152, %v1968
    %v1971 = vxor.u32 %v1970, 2147483648
    %v1972 = vmul.f32 %v1971, 1.442695
    %v1973 = vpow.pop %v1972
    %v1974 = vadd.f32 %v1973, 1.0
    %v1975 = vrcp.pop %v1974
    %v1976 = vmul.f32 1.0, %v1975
    %v1977 = vtanh.pop %v1970
    %v1979 = vrot.slane %v1884, 6
    %v1981 = vmul.f32 %v1976, %v1979
    %1983 = vrot.lane.b32.xlu0 %v1977, 64
    %v1984 = vpop.permute.xlu0 %1983
    %v1986 = vmul.f32 %v1976, %v1984
    %1988 = vrot.lane.b32.xlu0 %v1986, 32
    %v1989 = vpop.permute.xlu0 %1988
    %v1991 = vadd.f32 %v1981, %v1989
    %v1992 = vtanh.pop %v1991
    %1994 = vrot.lane.b32.xlu0 %v1992, 64
    %v1995 = vpop.permute.xlu0 %1994
    %v1997 = vmul.f32 %v1976, %v1995
    %v1998 = vld [vmem:[%s7] sm:$0xff]
    %v1999 = vld [vmem:[%s7 + $0x8] sm:$0xff]
    %v2000 = vld [vmem:[%s7 + $0x10] sm:$0xff]
    %v2001 = vld [vmem:[%s7 + $0x18] sm:$0xff]
    %v2002 = vld [vmem:[%s8] sm:$0x1]
    %v2004 = vlaneseq
    %v2005 = vshrl.u32 %v2004, 7
    %v2006 = vsub.s32 0, %v2005
    %v2007 = vrot.slane %v2002, %v2006
    %v2010 = vrot.slane %v1997, 6
    %2011 = vrot.lane.b32.xlu0 %v2010, 32
    %v2012 = vpop.permute.xlu0 %2011
    %v2013 = vsel %vm185, %v2012, 0
    %2015 = vmatprep.subr.mxu0 0.0
    %2016 = vmatpush1.msra.mxu0 %v1998
    %2017 = vmatprep.subr.mxu0 0.0
    %2018 = vmatpush1.msra.mxu0 %v1999
    %2019 = vmatprep.subr.mxu0 0.0
    %2020 = vmatpush1.msra.mxu0 %v2000
    %2021 = vmatprep.subr.mxu0 0.0
    %2022 = vmatpush1.msra.mxu0 %v2001
    %2023 = vmatprep.subr.mxu0 0.0
    %2024 = vmatpush1.msra.mxu0 0.0
    %2025 = vmatprep.subr.mxu0 0.0
    %2026 = vmatpush1.msra.mxu0 0.0
    %2027 = vmatprep.subr.mxu0 0.0
    %2028 = vmatpush1.msra.mxu0 0.0
    %2029 = vmatprep.subr.mxu0 0.0
    %2030 = vmatpush1.msra.mxu0 0.0
    %2031 = vmatprep.subr.mxu0 0.0
    %2032 = vmatpush1.msra.mxu0 0.0
    %2033 = vmatprep.subr.mxu0 0.0
    %2034 = vmatpush1.msra.mxu0 0.0
    %2035 = vmatprep.subr.mxu0 0.0
    %2036 = vmatpush1.msra.mxu0 0.0
    %2037 = vmatprep.subr.mxu0 0.0
    %2038 = vmatpush1.msra.mxu0 0.0
    %2039 = vmatprep.subr.mxu0 0.0
    %2040 = vmatpush1.msra.mxu0 0.0
    %2041 = vmatprep.subr.mxu0 0.0
    %2042 = vmatpush1.msra.mxu0 0.0
    %2043 = vmatprep.subr.mxu0 0.0
    %2044 = vmatpush1.msra.mxu0 0.0
    %2045 = vmatprep.subr.mxu0 0.0
    %2046 = vmatpush1.msra.mxu0 0.0
    %2047 = vmatprep.subr.mxu0 0.0
    %2048 = vmatpush1.msra.mxu0 0.0
    %2049 = vmatprep.subr.mxu0 0.0
    %2050 = vmatpush1.msra.mxu0 0.0
    %2051 = vmatprep.subr.mxu0 0.0
    %2052 = vmatpush1.msra.mxu0 0.0
    %2053 = vmatprep.subr.mxu0 0.0
    %2054 = vmatpush1.msra.mxu0 0.0
    %2055 = vmatprep.subr.mxu0 0.0
    %2056 = vmatpush1.msra.mxu0 0.0
    %2057 = vmatprep.subr.mxu0 0.0
    %2058 = vmatpush1.msra.mxu0 0.0
    %2059 = vmatprep.subr.mxu0 0.0
    %2060 = vmatpush1.msra.mxu0 0.0
    %2061 = vmatprep.subr.mxu0 0.0
    %2062 = vmatpush1.msra.mxu0 0.0
    %2063 = vmatprep.subr.mxu0 0.0
    %2064 = vmatpush1.msra.mxu0 0.0
    %2065 = vmatprep.subr.mxu0 0.0
    %2066 = vmatpush1.msra.mxu0 0.0
    %2067 = vmatprep.subr.mxu0 0.0
    %2068 = vmatpush1.msra.mxu0 0.0
    %2069 = vmatprep.subr.mxu0 0.0
    %2070 = vmatpush1.msra.mxu0 0.0
    %2071 = vmatprep.subr.mxu0 0.0
    %2072 = vmatpush1.msra.mxu0 0.0
    %2073 = vmatprep.subr.mxu0 0.0
    %2074 = vmatpush1.msra.mxu0 0.0
    %2075 = vmatprep.subr.mxu0 0.0
    %2076 = vmatpush1.msra.mxu0 0.0
    %2077 = vmatprep.subr.mxu0 0.0
    %2078 = vmatpush1.msra.mxu0 0.0
    %2079 = vmatprep.mubr.f32.mxu0 0.0
    %2080 = vmatmul.mubr.f32.gmra.mrb[0].mxu0 %v2013
    %v2081 = vpop.f32.mrb[0].mxu0
    %v2082 = vadd.f32 %v2007, %v2081
    %v2083 = vpop.f32.mrb[0].mxu0
    %2084 = vdwg.mxu0
    %vm2085 = vcmask 25600
    %2086 = vst.msk [vmem:[#allocation11] sm:$0x3] %vm2085, %v2082
    // Predicated region
    $region54: #{tpu_custom_call.1} parent=1 // pred_check
      _
    $region55: #{tpu_custom_call.1} parent=1 // pred_check_branch
      %2088 = sbr.rel (0) target = $region57
    $region56: #{tpu_custom_call.1} parent=1 // pred_region
      %s2090 = ssub.s32 32, 32
      %2091 = vsyncadd [#allocation5], %s2090
      %s2093 = sshll.u32 [#allocation11], 4
      %s2094 = int_to_ptr.vmem [resolvable:$true] %s2093
      %2096 = dma.vmem_to_hbm [thread:$0]  %s2094, 32, %s9, [#allocation5]
    $region57: #{tpu_custom_call.1} parent=1 // pred_fallthru
      _
    // Predicated region
    $region58: #{tpu_custom_call.1} parent=1 // pred_check
      _
    $region59: #{tpu_custom_call.1} parent=1 // pred_check_branch
      %2098 = sbr.rel (0) target = $region61
    $region60: #{tpu_custom_call.1} parent=1 // pred_region
      %2099 = dma.done [#allocation5], 32
    $region61: #{tpu_custom_call.1} parent=1 // pred_fallthru
      _
    %2100 = vsyncpa [#allocation4], 1
    %2101 = vsyncpa [#allocation7], 1
    %2102 = vsyncpa [#allocation10], 1
    %2103 = vsyncpa [#allocation5], 1

</llo_original>
